<compile_context>
chip_gen: v6e
topology: v6e:2x2x1
jax: 0.10.0
libtpu: 0.0.40
codegen_flags: <defaults>
</compile_context>

<pallas_src>
import functools

import jax
import jax.numpy as jnp
from jax import lax
from jax.experimental import pallas as pl
from jax.experimental.pallas import tpu as pltpu

KERNEL_SET = (2, 3, 6, 7)
MAX_KERNEL = 7
LN_EPS = 1e-5


# ----------------------------------------------------------------------------
# the single fused multi-step kernel
# ----------------------------------------------------------------------------
def _fused_rollout_kernel(
        xs_ref,               # (steps, in_dim, rf*B*N)  columns = (t, b, n), t slowest
        fc0_ref,              # (seq_len, L*B*N)         initial self.forecast (tail cols)
        wcat_ref, bcat_ref,   # start-folded inception filter|gate (2C, 7*in_dim), (2C, 1)
        gcat_ref,             # [G1 | G2] block-diag graph operators (LBN, 2*LBN)
        gwcat_ref, gbsum_ref, # [gw1 | gw2] 1x1 mixes (C, 2C), gb1+gb2 (C, 1)
        sel_ref, bT_ref,      # LayerNorm segmented-reduction selectors (LBN, B), (B, LBN)
        dw1_ref, db1_ref,     # [bw1; fw1] (2E, C), (2E, 1)
        dw2_ref, db2_ref,     # [[bw2, 0],[0, fw2]] (2*seq, 2E), (2*seq, 1)
        out_ref,              # (2, steps, seq_len, LBN): [0]=backcast, [1]=cum. forecast
        stk_ref,              # VMEM scratch (7*in_dim, LBN): im2col stack
        *, steps, B, N, L, out_dim, conv_dim, seq_len, in_dim):
    BN = B * N
    LBN = L * BN
    inv_cnt = 1.0 / float(conv_dim * N * out_dim)

    # Weights / operators loaded once, resident across all ODE steps.
    wcat, bcat = wcat_ref[...], bcat_ref[...]
    gcat = gcat_ref[...]
    gwcat, gbsum = gwcat_ref[...], gbsum_ref[...]
    sel, bT = sel_ref[...], bT_ref[...]
    dw1, db1 = dw1_ref[...], db1_ref[...]
    dw2, db2 = dw2_ref[...], db2_ref[...]

    fc_acc = fc0_ref[...]                                     # running self.forecast

    # TODO(synk): for large nfe switch this static unroll to an "arbitrary" grid
    # axis with the carried state in VMEM scratch; at nfe == 2 the unroll keeps
    # everything in registers and still costs a single launch.
    for s in range(steps):
        # --- module glue, in-kernel: x = x - saved_backcast (previous raw input)
        x_eff = xs_ref[s]
        if s > 0:
            x_eff = x_eff - xs_ref[s - 1]

        # --- start_conv (folded) + dilated_inception filter & gate: ONE matmul --
        # columns are (t, b, n) with t slowest => tap p is a lane shift of p*BN;
        # build the (7*in_dim, LBN) im2col stack in VMEM, then a single dot.
        for p in range(MAX_KERNEL):
            stk_ref[p * in_dim:(p + 1) * in_dim, :] = x_eff[:, p * BN:p * BN + LBN]
        fg = jnp.dot(wcat, stk_ref[...], preferred_element_type=jnp.float32) + bcat
        x1 = jnp.tanh(fg[:conv_dim, :]) * jax.nn.sigmoid(fg[conv_dim:, :])     # (C, LBN)
        # TODO(synk): F.dropout(x, 0.3) applied as identity (deterministic eval).

        # --- gconv1(x, adj) + gconv2(x, adj.T): two fused MXU matmuls -----------
        h = jnp.dot(x1, gcat, preferred_element_type=jnp.float32)              # (C, 2*LBN)
        h_st = jnp.concatenate([h[:, :LBN], h[:, LBN:]], axis=0)               # (2C, LBN)
        x2 = jnp.dot(gwcat, h_st, preferred_element_type=jnp.float32) + gbsum  # (C, LBN)

        # --- LayerNorm over (C, N, out_dim) per batch, segmented via matmul -----
        # statistics use only the kept last-out_dim time columns (sel); the rest
        # of the 128-lane tile is normalized with its batch stats and discarded
        # on the host, keeping every store lane-dense.
        s1 = jnp.dot(x2, sel, preferred_element_type=jnp.float32)              # (C, B)
        s2 = jnp.dot(x2 * x2, sel, preferred_element_type=jnp.float32)         # (C, B)
        mu = jnp.sum(s1, axis=0, keepdims=True) * inv_cnt                      # (1, B)
        ex2 = jnp.sum(s2, axis=0, keepdims=True) * inv_cnt
        rsig = lax.rsqrt(ex2 - mu * mu + LN_EPS)                               # (1, B)
        mu_col = jnp.dot(mu, bT, preferred_element_type=jnp.float32)           # (1, LBN)
        rs_col = jnp.dot(rsig, bT, preferred_element_type=jnp.float32)         # (1, LBN)
        zn = (x2 - mu_col) * rs_col                                            # (C, LBN)

        # --- both decoders: stacked first layer, block-diagonal second layer ----
        hd = jnp.maximum(
            jnp.dot(dw1, zn, preferred_element_type=jnp.float32) + db1, 0.0)   # (2E, LBN)
        dec = jnp.dot(dw2, hd, preferred_element_type=jnp.float32) + db2       # (2*seq, LBN)

        fc_acc = fc_acc + dec[seq_len:, :]                    # self.forecast += forecast
        out_ref[0, s, :, :] = dec[:seq_len, :]                # backcast of this call
        out_ref[1, s, :, :] = fc_acc                          # cumulative forecast


# ----------------------------------------------------------------------------
# host-side precompute (hoisted out of the hot path)
# ----------------------------------------------------------------------------
def _norm_adj(adj):
    a = adj + jnp.eye(adj.shape[0], dtype=adj.dtype)
    return a / jnp.sum(a, axis=1, keepdims=True)


def make_graph_operator(adj, L, B):
    """[kron(I_{L*B}, norm(A)^T) | kron(I_{L*B}, norm(A^T)^T)] — adjacency is
    step-invariant, so this is built once.
    TODO(synk): at larger L*B*N replace this O((L*B*N)^2) block-diagonal form by
    per-(t,b)-group (N, N) right-multiplies (loop or grid) to stay inside VMEM
    (v7x: 64 MiB physical / 32 MiB default scoped limit)."""
    eye = jnp.eye(L * B, dtype=jnp.float32)
    g1 = jnp.kron(eye, _norm_adj(adj).T)
    g2 = jnp.kron(eye, _norm_adj(adj.T).T)
    return jnp.concatenate([g1, g2], axis=1)


def make_ln_selectors(B, N, L, out_dim):
    """sel (LBN, B): one-hot batch membership restricted to the kept last-out_dim
    time columns (used for the segmented stat sums).  bT (B, LBN): plain batch
    one-hot (used to broadcast mu / rsigma back to every column)."""
    j = jnp.arange(L * B * N)
    onehot = ((j // N) % B == jnp.arange(B)[:, None]).astype(jnp.float32)   # (B, LBN)
    keep = (j // (B * N) >= L - out_dim).astype(jnp.float32)                # (LBN,)
    sel = onehot.T * keep[:, None]                                          # (LBN, B)
    return sel, onehot


def pack_params(p):
    """Fold start_conv into the inception convs and concatenate weight pairs so
    the kernel issues a handful of MXU-filling matmuls per step."""
    conv_dim, in_dim = p["start_w"].shape
    ws, bs = p["start_w"], p["start_b"]

    def fold(wpad, binc):
        # exact fold of the 1x1 start conv (affine) into the length-7 packed conv
        wf = jnp.einsum("cop,oi->cpi", wpad, ws).reshape(conv_dim, MAX_KERNEL * in_dim)
        bf = binc + jnp.sum(wpad, axis=2) @ bs
        return wf, bf

    wf1, bf1 = fold(p["inc1_wpad"], p["inc1_b"])
    wf2, bf2 = fold(p["inc2_wpad"], p["inc2_b"])
    zb = jnp.zeros_like(p["bd_w2"])
    zf = jnp.zeros_like(p["fd_w2"])
    return {
        "wcat": jnp.concatenate([wf1, wf2], axis=0),                     # (2C, 7*in_dim)
        "bcat": jnp.concatenate([bf1, bf2], axis=0),                     # (2C, 1)
        "gwcat": jnp.concatenate([p["g1_w"], p["g2_w"]], axis=1),        # (C, 2C)
        "gbsum": p["g1_b"] + p["g2_b"],                                  # (C, 1)
        "dw1": jnp.concatenate([p["bd_w1"], p["fd_w1"]], axis=0),        # (2E, C)
        "db1": jnp.concatenate([p["bd_b1"], p["fd_b1"]], axis=0),        # (2E, 1)
        "dw2": jnp.concatenate([jnp.concatenate([p["bd_w2"], zf], axis=1),
                                jnp.concatenate([zb, p["fd_w2"]], axis=1)],
                               axis=0),                                  # (2*seq, 2E)
        "db2": jnp.concatenate([p["bd_b2"], p["fd_b2"]], axis=0),        # (2*seq, 1)
    }


# ----------------------------------------------------------------------------
# wrapper: one pallas_call runs ALL forward calls of the block
# ----------------------------------------------------------------------------
def beats_ode_block_rollout(packed, cfg, xs_raw, gcat, ln_sel, ln_bT, forecast0):
    """Run `steps` successive BeatsODEBlock.forward calls in ONE kernel launch.

    xs_raw: (steps, B, in_dim, N, T) raw inputs of each call (the module's
            backcast subtraction between calls happens in-kernel).
    Returns (backcasts, forecasts, final_backcast_state); backcasts / forecasts
    are (steps, B, out_dim, N, seq_len); forecasts are cumulative self.forecast."""
    rf, out_dim = cfg["receptive_field"], cfg["out_dim"]
    steps, B, in_dim, N, T = xs_raw.shape
    conv_dim = packed["gwcat"].shape[0]
    end_dim = packed["dw1"].shape[0] // 2
    seq_len = packed["dw2"].shape[0] // 2
    L = rf - (MAX_KERNEL - 1)
    BN, LBN = B * N, (rf - (MAX_KERNEL - 1)) * B * N
    assert L >= out_dim, "receptive_field too small for the x[..., -out_dim:] slice"

    # entry layout: per step (B, C, N, T) -> pad/slice time to rf -> (C, rf*B*N)
    if T < rf:
        xs_t = jnp.pad(xs_raw, ((0, 0),) * 4 + ((rf - T, 0),))
    elif T > rf:
        xs_t = xs_raw[..., -rf:]
    else:
        xs_t = xs_raw
    xs = jnp.transpose(xs_t, (0, 2, 4, 1, 3)).reshape(steps, in_dim, rf * BN)

    # initial self.forecast -> (seq_len, LBN), values in the kept tail columns
    fc0 = jnp.transpose(forecast0, (3, 1, 0, 2)).reshape(seq_len, out_dim * BN)
    fc0 = jnp.pad(fc0, ((0, 0), (LBN - out_dim * BN, 0)))

    inputs = (xs, fc0, packed["wcat"], packed["bcat"], gcat, packed["gwcat"],
              packed["gbsum"], ln_sel, ln_bT, packed["dw1"], packed["db1"],
              packed["dw2"], packed["db2"])

    kern = functools.partial(
        _fused_rollout_kernel, steps=steps, B=B, N=N, L=L, out_dim=out_dim,
        conv_dim=conv_dim, seq_len=seq_len, in_dim=in_dim)
    vmem = pl.BlockSpec(memory_space=pltpu.MemorySpace.VMEM)

    mm_flops = 2 * LBN * (2 * conv_dim * MAX_KERNEL * in_dim      # inception
                          + conv_dim * 2 * LBN                    # x1 @ [G1|G2]
                          + conv_dim * 2 * conv_dim               # 1x1 mixes
                          + 3 * conv_dim * B                      # LN segmented sums
                          + 2 * end_dim * conv_dim                # decoder layer 1
                          + 2 * seq_len * 2 * end_dim)            # decoder layer 2
    nbytes = (sum(int(a.size) * a.dtype.itemsize for a in inputs)
              + 2 * steps * seq_len * LBN * 4)
    cost = pl.CostEstimate(flops=int(steps * mm_flops),
                           transcendentals=int(steps * (2 * conv_dim * LBN + 2 * B)),
                           bytes_accessed=int(nbytes))

    out = pl.pallas_call(
        kern,
        out_shape=jax.ShapeDtypeStruct((2, steps, seq_len, LBN), jnp.float32),
        in_specs=[vmem] * len(inputs),
        out_specs=vmem,
        scratch_shapes=[pltpu.VMEM((MAX_KERNEL * in_dim, LBN), jnp.float32)],
        compiler_params=pltpu.CompilerParams(vmem_limit_bytes=32 * 1024 * 1024),
        cost_estimate=cost,
    )(*inputs)

    # exit layout: keep the kept-time tail lanes, (seq,(o,b,n)) -> (B,out_dim,N,seq)
    tail = out[..., LBN - out_dim * BN:]                       # (2, steps, seq, out_dim*BN)
    tail = tail.reshape(2, steps, seq_len, out_dim, B, N)
    tail = jnp.transpose(tail, (0, 1, 4, 3, 5, 2))             # (2, steps, B, out_dim, N, seq)
    backcasts, forecasts = tail[0], tail[1]
    return backcasts, forecasts, xs_raw[-1]


# ----------------------------------------------------------------------------
# deterministic parameter init (shapes follow the module's __init__)
# ----------------------------------------------------------------------------
def _dense(key, o, i, scale=None):
    scale = (1.0 / (i ** 0.5)) if scale is None else scale
    return jax.random.normal(key, (o, i), jnp.float32) * scale


def _bias(key, o):
    return jax.random.normal(key, (o, 1), jnp.float32) * 0.01


def _init_inception_raw(key, c_in, c_out):
    """dilated_inception (MTGNN): kernel_set [2,3,6,7], c_out/4 channels each,
    outputs truncated to the kernel-7 length and channel-concatenated == one
    right-aligned zero-padded length-7 conv with weight (c_out, c_in, 7)."""
    c4 = c_out // len(KERNEL_SET)
    wpad = jnp.zeros((c_out, c_in, MAX_KERNEL), jnp.float32)
    biases = []
    for s, k in enumerate(KERNEL_SET):
        key, kw, kb = jax.random.split(key, 3)
        w = jax.random.normal(kw, (c4, c_in, k), jnp.float32) * (1.0 / (c_in * k) ** 0.5)
        wpad = wpad.at[s * c4:(s + 1) * c4, :, MAX_KERNEL - k:].set(w)
        biases.append(jax.random.normal(kb, (c4,), jnp.float32) * 0.01)
    return wpad, jnp.concatenate(biases).reshape(-1, 1)


def init_params(key, in_dim, seq_len, conv_dim, end_dim):
    ks = jax.random.split(key, 16)
    inc1_w, inc1_b = _init_inception_raw(ks[0], conv_dim, conv_dim)
    inc2_w, inc2_b = _init_inception_raw(ks[1], conv_dim, conv_dim)
    return {
        "start_w": _dense(ks[2], conv_dim, in_dim),
        "start_b": _bias(ks[3], conv_dim),
        "inc1_wpad": inc1_w, "inc1_b": inc1_b,
        "inc2_wpad": inc2_w, "inc2_b": inc2_b,
        "g1_w": _dense(ks[4], conv_dim, conv_dim),
        "g1_b": _bias(ks[5], conv_dim),
        "g2_w": _dense(ks[6], conv_dim, conv_dim),
        "g2_b": _bias(ks[7], conv_dim),
        "bd_w1": _dense(ks[8], end_dim, conv_dim),
        "bd_b1": _bias(ks[9], end_dim),
        "bd_w2": _dense(ks[10], seq_len, end_dim),
        "bd_b2": _bias(ks[11], seq_len),
        "fd_w1": _dense(ks[12], end_dim, conv_dim),
        "fd_b1": _bias(ks[13], end_dim),
        "fd_w2": _dense(ks[14], seq_len, end_dim),
        "fd_b2": _bias(ks[15], seq_len),
    }


# ----------------------------------------------------------------------------
if __name__ == "__main__":
    # BeatsODEBlock(in_dim=2, out_dim=2, seq_len=12, time_1=1.0, step_size_1=0.5,
    #               time_2=1.0, step_size_2=1.0, conv_dim=32, end_dim=64)
    B, in_dim, out_dim, N, seq_len = 2, 2, 2, 8, 12
    time_1, step_size_1 = 1.0, 0.5
    conv_dim, end_dim = 32, 64
    nfe = round(time_1 / step_size_1)                         # 2 forward calls
    receptive_field = nfe * (MAX_KERNEL - 1) + out_dim        # 2*6 + 2 = 14
    cfg = {"receptive_field": receptive_field, "out_dim": out_dim}

    key = jax.random.PRNGKey(0)
    kx, kadj, kp = jax.random.split(key, 3)
    x = jax.random.normal(kx, (B, in_dim, N, seq_len), jnp.float32)
    adj = jax.random.uniform(kadj, (N, N), jnp.float32)
    forecast0 = jnp.zeros((B, out_dim, N, seq_len), jnp.float32)

    params = init_params(kp, in_dim, seq_len, conv_dim, end_dim)
    packed = pack_params(params)                              # hoisted weight packing

    L = receptive_field - (MAX_KERNEL - 1)
    gcat = make_graph_operator(adj, L, B)                     # hoisted (adj step-invariant)
    ln_sel, ln_bT = make_ln_selectors(B, N, L, out_dim)

    # same raw x fed to every forward call: exercises the saved-backcast
    # subtraction path exactly as calling .forward() nfe times with a fixed input.
    xs_raw = jnp.broadcast_to(x, (nfe,) + x.shape)

    rollout = jax.jit(functools.partial(beats_ode_block_rollout, packed, cfg))
    backcasts, forecasts, state = rollout(xs_raw, gcat, ln_sel, ln_bT, forecast0)
    jax.block_until_ready((backcasts, forecasts, state))

    assert backcasts.shape == (nfe, B, out_dim, N, seq_len)
    assert forecasts.shape == (nfe, B, out_dim, N, seq_len)
    assert state.shape == x.shape
    assert bool(jnp.all(jnp.isfinite(backcasts)))
    assert bool(jnp.all(jnp.isfinite(forecasts)))
    print("KERNEL_OK")
</pallas_src>

<mosaic_0001>
module attributes {stable_mosaic.version = 11 : i64} {
  func.func @_fused_rollout_kernel(%arg0: memref<2x2x224xf32, #tpu.memory_space<vmem>>, %arg1: memref<12x128xf32, #tpu.memory_space<vmem>>, %arg2: memref<64x14xf32, #tpu.memory_space<vmem>>, %arg3: memref<64x1xf32, #tpu.memory_space<vmem>>, %arg4: memref<128x256xf32, #tpu.memory_space<vmem>>, %arg5: memref<32x64xf32, #tpu.memory_space<vmem>>, %arg6: memref<32x1xf32, #tpu.memory_space<vmem>>, %arg7: memref<128x2xf32, #tpu.memory_space<vmem>>, %arg8: memref<2x128xf32, #tpu.memory_space<vmem>>, %arg9: memref<128x32xf32, #tpu.memory_space<vmem>>, %arg10: memref<128x1xf32, #tpu.memory_space<vmem>>, %arg11: memref<24x128xf32, #tpu.memory_space<vmem>>, %arg12: memref<24x1xf32, #tpu.memory_space<vmem>>, %arg13: memref<2x2x12x128xf32, #tpu.memory_space<vmem>>, %arg14: memref<14x128xf32, #tpu.memory_space<vmem>>) attributes {dimension_semantics = [], scalar_prefetch = 0 : i64, scratch_operands = 1 : i64, tpu.core_type = #tpu.core_type<tc>} {
    %c0 = arith.constant 0 : index
    %c0_0 = arith.constant 0 : index
    %0 = vector.load %arg2[%c0, %c0_0] : memref<64x14xf32, #tpu.memory_space<vmem>>, vector<64x14xf32>
    %c0_1 = arith.constant 0 : index
    %c0_2 = arith.constant 0 : index
    %1 = vector.load %arg3[%c0_1, %c0_2] : memref<64x1xf32, #tpu.memory_space<vmem>>, vector<64x1xf32>
    %c0_3 = arith.constant 0 : index
    %c0_4 = arith.constant 0 : index
    %2 = vector.load %arg4[%c0_3, %c0_4] : memref<128x256xf32, #tpu.memory_space<vmem>>, vector<128x256xf32>
    %c0_5 = arith.constant 0 : index
    %c0_6 = arith.constant 0 : index
    %3 = vector.load %arg5[%c0_5, %c0_6] : memref<32x64xf32, #tpu.memory_space<vmem>>, vector<32x64xf32>
    %c0_7 = arith.constant 0 : index
    %c0_8 = arith.constant 0 : index
    %4 = vector.load %arg6[%c0_7, %c0_8] : memref<32x1xf32, #tpu.memory_space<vmem>>, vector<32x1xf32>
    %c0_9 = arith.constant 0 : index
    %c0_10 = arith.constant 0 : index
    %5 = vector.load %arg7[%c0_9, %c0_10] : memref<128x2xf32, #tpu.memory_space<vmem>>, vector<128x2xf32>
    %c0_11 = arith.constant 0 : index
    %c0_12 = arith.constant 0 : index
    %6 = vector.load %arg8[%c0_11, %c0_12] : memref<2x128xf32, #tpu.memory_space<vmem>>, vector<2x128xf32>
    %c0_13 = arith.constant 0 : index
    %c0_14 = arith.constant 0 : index
    %7 = vector.load %arg9[%c0_13, %c0_14] : memref<128x32xf32, #tpu.memory_space<vmem>>, vector<128x32xf32>
    %c0_15 = arith.constant 0 : index
    %c0_16 = arith.constant 0 : index
    %8 = vector.load %arg10[%c0_15, %c0_16] : memref<128x1xf32, #tpu.memory_space<vmem>>, vector<128x1xf32>
    %c0_17 = arith.constant 0 : index
    %c0_18 = arith.constant 0 : index
    %9 = vector.load %arg11[%c0_17, %c0_18] : memref<24x128xf32, #tpu.memory_space<vmem>>, vector<24x128xf32>
    %c0_19 = arith.constant 0 : index
    %c0_20 = arith.constant 0 : index
    %10 = vector.load %arg12[%c0_19, %c0_20] : memref<24x1xf32, #tpu.memory_space<vmem>>, vector<24x1xf32>
    %c0_21 = arith.constant 0 : index
    %c0_22 = arith.constant 0 : index
    %11 = vector.load %arg1[%c0_21, %c0_22] : memref<12x128xf32, #tpu.memory_space<vmem>>, vector<12x128xf32>
    %c0_23 = arith.constant 0 : index
    %c0_24 = arith.constant 0 : index
    %c0_25 = arith.constant 0 : index
    %12 = vector.load %arg0[%c0_23, %c0_24, %c0_25] : memref<2x2x224xf32, #tpu.memory_space<vmem>>, vector<1x2x224xf32>
    %13 = vector.shape_cast %12 : vector<1x2x224xf32> to vector<2x224xf32>
    %14 = vector.extract_strided_slice %13 {offsets = [0, 0], sizes = [2, 128], strides = [1, 1]} : vector<2x224xf32> to vector<2x128xf32>
    %c0_26 = arith.constant 0 : index
    %c0_27 = arith.constant 0 : index
    %15 = vector.load %arg14[%c0_26, %c0_27] : memref<14x128xf32, #tpu.memory_space<vmem>>, vector<2x128xf32>
    tpu.vector_store %arg14[%c0_26, %c0_27], %14 {strides = array<i32>} : memref<14x128xf32, #tpu.memory_space<vmem>>, vector<2x128xf32>,
    %16 = vector.extract_strided_slice %13 {offsets = [0, 16], sizes = [2, 128], strides = [1, 1]} : vector<2x224xf32> to vector<2x128xf32>
    %c2 = arith.constant 2 : index
    %c0_28 = arith.constant 0 : index
    %17 = vector.load %arg14[%c2, %c0_28] : memref<14x128xf32, #tpu.memory_space<vmem>>, vector<2x128xf32>
    tpu.vector_store %arg14[%c2, %c0_28], %16 {strides = array<i32>} : memref<14x128xf32, #tpu.memory_space<vmem>>, vector<2x128xf32>,
    %18 = vector.extract_strided_slice %13 {offsets = [0, 32], sizes = [2, 128], strides = [1, 1]} : vector<2x224xf32> to vector<2x128xf32>
    %c4 = arith.constant 4 : index
    %c0_29 = arith.constant 0 : index
    %19 = vector.load %arg14[%c4, %c0_29] : memref<14x128xf32, #tpu.memory_space<vmem>>, vector<2x128xf32>
    tpu.vector_store %arg14[%c4, %c0_29], %18 {strides = array<i32>} : memref<14x128xf32, #tpu.memory_space<vmem>>, vector<2x128xf32>,
    %20 = vector.extract_strided_slice %13 {offsets = [0, 48], sizes = [2, 128], strides = [1, 1]} : vector<2x224xf32> to vector<2x128xf32>
    %c6 = arith.constant 6 : index
    %c0_30 = arith.constant 0 : index
    %21 = vector.load %arg14[%c6, %c0_30] : memref<14x128xf32, #tpu.memory_space<vmem>>, vector<2x128xf32>
    tpu.vector_store %arg14[%c6, %c0_30], %20 {strides = array<i32>} : memref<14x128xf32, #tpu.memory_space<vmem>>, vector<2x128xf32>,
    %22 = vector.extract_strided_slice %13 {offsets = [0, 64], sizes = [2, 128], strides = [1, 1]} : vector<2x224xf32> to vector<2x128xf32>
    %c8 = arith.constant 8 : index
    %c0_31 = arith.constant 0 : index
    %23 = vector.load %arg14[%c8, %c0_31] : memref<14x128xf32, #tpu.memory_space<vmem>>, vector<2x128xf32>
    tpu.vector_store %arg14[%c8, %c0_31], %22 {strides = array<i32>} : memref<14x128xf32, #tpu.memory_space<vmem>>, vector<2x128xf32>,
    %24 = vector.extract_strided_slice %13 {offsets = [0, 80], sizes = [2, 128], strides = [1, 1]} : vector<2x224xf32> to vector<2x128xf32>
    %c10 = arith.constant 10 : index
    %c0_32 = arith.constant 0 : index
    %25 = vector.load %arg14[%c10, %c0_32] : memref<14x128xf32, #tpu.memory_space<vmem>>, vector<2x128xf32>
    tpu.vector_store %arg14[%c10, %c0_32], %24 {strides = array<i32>} : memref<14x128xf32, #tpu.memory_space<vmem>>, vector<2x128xf32>,
    %26 = vector.extract_strided_slice %13 {offsets = [0, 96], sizes = [2, 128], strides = [1, 1]} : vector<2x224xf32> to vector<2x128xf32>
    %c12 = arith.constant 12 : index
    %c0_33 = arith.constant 0 : index
    %27 = vector.load %arg14[%c12, %c0_33] : memref<14x128xf32, #tpu.memory_space<vmem>>, vector<2x128xf32>
    tpu.vector_store %arg14[%c12, %c0_33], %26 {strides = array<i32>} : memref<14x128xf32, #tpu.memory_space<vmem>>, vector<2x128xf32>,
    %c0_34 = arith.constant 0 : index
    %c0_35 = arith.constant 0 : index
    %28 = vector.load %arg14[%c0_34, %c0_35] : memref<14x128xf32, #tpu.memory_space<vmem>>, vector<14x128xf32>
    %cst = arith.constant dense<0.000000e+00> : vector<64x128xf32>
    %29 = tpu.matmul %0, %28, %cst {dimension_numbers = #tpu.dot_dimension_numbers<[1], [0], [0], [1], [0, 0, 1, 1], [], []>} : vector<64x14xf32>, vector<14x128xf32>, vector<64x128xf32> -> vector<64x128xf32>
    %30 = vector.broadcast %1 : vector<64x1xf32> to vector<64x128xf32>
    %31 = arith.addf %29, %30 : vector<64x128xf32>
    %32 = vector.extract_strided_slice %31 {offsets = [0, 0], sizes = [32, 128], strides = [1, 1]} : vector<64x128xf32> to vector<32x128xf32>
    %33 = math.tanh %32 : vector<32x128xf32>
    %34 = vector.extract_strided_slice %31 {offsets = [32, 0], sizes = [32, 128], strides = [1, 1]} : vector<64x128xf32> to vector<32x128xf32>
    %35 = arith.negf %34 : vector<32x128xf32>
    %36 = math.exp %35 : vector<32x128xf32>
    %cst_36 = arith.constant 1.000000e+00 : f32
    %37 = vector.broadcast %cst_36 : f32 to vector<32x128xf32>
    %38 = arith.addf %37, %36 : vector<32x128xf32>
    %39 = arith.divf %37, %38 : vector<32x128xf32>
    %40 = arith.mulf %33, %39 : vector<32x128xf32>
    %cst_37 = arith.constant dense<0.000000e+00> : vector<32x256xf32>
    %41 = tpu.matmul %40, %2, %cst_37 {dimension_numbers = #tpu.dot_dimension_numbers<[1], [0], [0], [1], [0, 0, 1, 1], [], []>} : vector<32x128xf32>, vector<128x256xf32>, vector<32x256xf32> -> vector<32x256xf32>
    %42 = vector.extract_strided_slice %41 {offsets = [0, 0], sizes = [32, 128], strides = [1, 1]} : vector<32x256xf32> to vector<32x128xf32>
    %43 = vector.extract_strided_slice %41 {offsets = [0, 128], sizes = [32, 128], strides = [1, 1]} : vector<32x256xf32> to vector<32x128xf32>
    %44 = tpu.concatenate %42, %43 in 0 : vector<32x128xf32>, vector<32x128xf32> -> vector<64x128xf32>
    %cst_38 = arith.constant dense<0.000000e+00> : vector<32x128xf32>
    %45 = tpu.matmul %3, %44, %cst_38 {dimension_numbers = #tpu.dot_dimension_numbers<[1], [0], [0], [1], [0, 0, 1, 1], [], []>} : vector<32x64xf32>, vector<64x128xf32>, vector<32x128xf32> -> vector<32x128xf32>
    %46 = vector.broadcast %4 : vector<32x1xf32> to vector<32x128xf32>
    %47 = arith.addf %45, %46 : vector<32x128xf32>
    %cst_39 = arith.constant dense<0.000000e+00> : vector<32x2xf32>
    %48 = tpu.matmul %47, %5, %cst_39 {dimension_numbers = #tpu.dot_dimension_numbers<[1], [0], [0], [1], [0, 0, 1, 1], [], []>} : vector<32x128xf32>, vector<128x2xf32>, vector<32x2xf32> -> vector<32x2xf32>
    %49 = arith.mulf %47, %47 : vector<32x128xf32>
    %cst_40 = arith.constant dense<0.000000e+00> : vector<32x2xf32>
    %50 = tpu.matmul %49, %5, %cst_40 {dimension_numbers = #tpu.dot_dimension_numbers<[1], [0], [0], [1], [0, 0, 1, 1], [], []>} : vector<32x128xf32>, vector<128x2xf32>, vector<32x2xf32> -> vector<32x2xf32>
    %cst_41 = arith.constant dense<0.000000e+00> : vector<2xf32>
    %51 = vector.multi_reduction <add>, %48, %cst_41 [0] : vector<32x2xf32> to vector<2xf32>
    %52 = vector.shape_cast %51 : vector<2xf32> to vector<1x2xf32>
    %cst_42 = arith.constant 0.001953125 : f32
    %53 = vector.broadcast %cst_42 : f32 to vector<1x2xf32>
    %54 = arith.mulf %52, %53 : vector<1x2xf32>
    %cst_43 = arith.constant dense<0.000000e+00> : vector<2xf32>
    %55 = vector.multi_reduction <add>, %50, %cst_43 [0] : vector<32x2xf32> to vector<2xf32>
    %56 = vector.shape_cast %55 : vector<2xf32> to vector<1x2xf32>
    %cst_44 = arith.constant 0.001953125 : f32
    %57 = vector.broadcast %cst_44 : f32 to vector<1x2xf32>
    %58 = arith.mulf %56, %57 : vector<1x2xf32>
    %59 = arith.mulf %54, %54 : vector<1x2xf32>
    %60 = arith.subf %58, %59 : vector<1x2xf32>
    %cst_45 = arith.constant 9.99999974E-6 : f32
    %61 = vector.broadcast %cst_45 : f32 to vector<1x2xf32>
    %62 = arith.addf %60, %61 : vector<1x2xf32>
    %63 = math.rsqrt %62 : vector<1x2xf32>
    %cst_46 = arith.constant dense<0.000000e+00> : vector<1x128xf32>
    %64 = tpu.matmul %54, %6, %cst_46 {dimension_numbers = #tpu.dot_dimension_numbers<[1], [0], [0], [1], [0, 0, 1, 1], [], []>} : vector<1x2xf32>, vector<2x128xf32>, vector<1x128xf32> -> vector<1x128xf32>
    %cst_47 = arith.constant dense<0.000000e+00> : vector<1x128xf32>
    %65 = tpu.matmul %63, %6, %cst_47 {dimension_numbers = #tpu.dot_dimension_numbers<[1], [0], [0], [1], [0, 0, 1, 1], [], []>} : vector<1x2xf32>, vector<2x128xf32>, vector<1x128xf32> -> vector<1x128xf32>
    %66 = vector.broadcast %64 : vector<1x128xf32> to vector<32x128xf32>
    %67 = arith.subf %47, %66 : vector<32x128xf32>
    %68 = vector.broadcast %65 : vector<1x128xf32> to vector<32x128xf32>
    %69 = arith.mulf %67, %68 : vector<32x128xf32>
    %cst_48 = arith.constant dense<0.000000e+00> : vector<128x128xf32>
    %70 = tpu.matmul %7, %69, %cst_48 {dimension_numbers = #tpu.dot_dimension_numbers<[1], [0], [0], [1], [0, 0, 1, 1], [], []>} : vector<128x32xf32>, vector<32x128xf32>, vector<128x128xf32> -> vector<128x128xf32>
    %71 = vector.broadcast %8 : vector<128x1xf32> to vector<128x128xf32>
    %72 = arith.addf %70, %71 : vector<128x128xf32>
    %cst_49 = arith.constant 0.000000e+00 : f32
    %73 = vector.broadcast %cst_49 : f32 to vector<128x128xf32>
    %74 = arith.maximumf %72, %73 : vector<128x128xf32>
    %cst_50 = arith.constant dense<0.000000e+00> : vector<24x128xf32>
    %75 = tpu.matmul %9, %74, %cst_50 {dimension_numbers = #tpu.dot_dimension_numbers<[1], [0], [0], [1], [0, 0, 1, 1], [], []>} : vector<24x128xf32>, vector<128x128xf32>, vector<24x128xf32> -> vector<24x128xf32>
    %76 = vector.broadcast %10 : vector<24x1xf32> to vector<24x128xf32>
    %77 = arith.addf %75, %76 : vector<24x128xf32>
    %78 = vector.extract_strided_slice %77 {offsets = [12, 0], sizes = [12, 128], strides = [1, 1]} : vector<24x128xf32> to vector<12x128xf32>
    %79 = arith.addf %11, %78 : vector<12x128xf32>
    %80 = vector.extract_strided_slice %77 {offsets = [0, 0], sizes = [12, 128], strides = [1, 1]} : vector<24x128xf32> to vector<12x128xf32>
    %c0_51 = arith.constant 0 : index
    %c0_52 = arith.constant 0 : index
    %c0_53 = arith.constant 0 : index
    %c0_54 = arith.constant 0 : index
    %81 = vector.load %arg13[%c0_51, %c0_52, %c0_53, %c0_54] : memref<2x2x12x128xf32, #tpu.memory_space<vmem>>, vector<1x1x12x128xf32>
    %82 = vector.shape_cast %81 : vector<1x1x12x128xf32> to vector<12x128xf32>
    %83 = vector.shape_cast %80 : vector<12x128xf32> to vector<1x1x12x128xf32>
    tpu.vector_store %arg13[%c0_51, %c0_52, %c0_53, %c0_54], %83 {strides = array<i32>} : memref<2x2x12x128xf32, #tpu.memory_space<vmem>>, vector<1x1x12x128xf32>,
    %c1 = arith.constant 1 : index
    %c0_55 = arith.constant 0 : index
    %c0_56 = arith.constant 0 : index
    %c0_57 = arith.constant 0 : index
    %84 = vector.load %arg13[%c1, %c0_55, %c0_56, %c0_57] : memref<2x2x12x128xf32, #tpu.memory_space<vmem>>, vector<1x1x12x128xf32>
    %85 = vector.shape_cast %84 : vector<1x1x12x128xf32> to vector<12x128xf32>
    %86 = vector.shape_cast %79 : vector<12x128xf32> to vector<1x1x12x128xf32>
    tpu.vector_store %arg13[%c1, %c0_55, %c0_56, %c0_57], %86 {strides = array<i32>} : memref<2x2x12x128xf32, #tpu.memory_space<vmem>>, vector<1x1x12x128xf32>,
    %c1_58 = arith.constant 1 : index
    %c0_59 = arith.constant 0 : index
    %c0_60 = arith.constant 0 : index
    %87 = vector.load %arg0[%c1_58, %c0_59, %c0_60] : memref<2x2x224xf32, #tpu.memory_space<vmem>>, vector<1x2x224xf32>
    %88 = vector.shape_cast %87 : vector<1x2x224xf32> to vector<2x224xf32>
    %c0_61 = arith.constant 0 : index
    %c0_62 = arith.constant 0 : index
    %c0_63 = arith.constant 0 : index
    %89 = vector.load %arg0[%c0_61, %c0_62, %c0_63] : memref<2x2x224xf32, #tpu.memory_space<vmem>>, vector<1x2x224xf32>
    %90 = vector.shape_cast %89 : vector<1x2x224xf32> to vector<2x224xf32>
    %91 = arith.subf %88, %90 : vector<2x224xf32>
    %92 = vector.extract_strided_slice %91 {offsets = [0, 0], sizes = [2, 128], strides = [1, 1]} : vector<2x224xf32> to vector<2x128xf32>
    %c0_64 = arith.constant 0 : index
    %c0_65 = arith.constant 0 : index
    %93 = vector.load %arg14[%c0_64, %c0_65] : memref<14x128xf32, #tpu.memory_space<vmem>>, vector<2x128xf32>
    tpu.vector_store %arg14[%c0_64, %c0_65], %92 {strides = array<i32>} : memref<14x128xf32, #tpu.memory_space<vmem>>, vector<2x128xf32>,
    %94 = vector.extract_strided_slice %91 {offsets = [0, 16], sizes = [2, 128], strides = [1, 1]} : vector<2x224xf32> to vector<2x128xf32>
    %c2_66 = arith.constant 2 : index
    %c0_67 = arith.constant 0 : index
    %95 = vector.load %arg14[%c2_66, %c0_67] : memref<14x128xf32, #tpu.memory_space<vmem>>, vector<2x128xf32>
    tpu.vector_store %arg14[%c2_66, %c0_67], %94 {strides = array<i32>} : memref<14x128xf32, #tpu.memory_space<vmem>>, vector<2x128xf32>,
    %96 = vector.extract_strided_slice %91 {offsets = [0, 32], sizes = [2, 128], strides = [1, 1]} : vector<2x224xf32> to vector<2x128xf32>
    %c4_68 = arith.constant 4 : index
    %c0_69 = arith.constant 0 : index
    %97 = vector.load %arg14[%c4_68, %c0_69] : memref<14x128xf32, #tpu.memory_space<vmem>>, vector<2x128xf32>
    tpu.vector_store %arg14[%c4_68, %c0_69], %96 {strides = array<i32>} : memref<14x128xf32, #tpu.memory_space<vmem>>, vector<2x128xf32>,
    %98 = vector.extract_strided_slice %91 {offsets = [0, 48], sizes = [2, 128], strides = [1, 1]} : vector<2x224xf32> to vector<2x128xf32>
    %c6_70 = arith.constant 6 : index
    %c0_71 = arith.constant 0 : index
    %99 = vector.load %arg14[%c6_70, %c0_71] : memref<14x128xf32, #tpu.memory_space<vmem>>, vector<2x128xf32>
    tpu.vector_store %arg14[%c6_70, %c0_71], %98 {strides = array<i32>} : memref<14x128xf32, #tpu.memory_space<vmem>>, vector<2x128xf32>,
    %100 = vector.extract_strided_slice %91 {offsets = [0, 64], sizes = [2, 128], strides = [1, 1]} : vector<2x224xf32> to vector<2x128xf32>
    %c8_72 = arith.constant 8 : index
    %c0_73 = arith.constant 0 : index
    %101 = vector.load %arg14[%c8_72, %c0_73] : memref<14x128xf32, #tpu.memory_space<vmem>>, vector<2x128xf32>
    tpu.vector_store %arg14[%c8_72, %c0_73], %100 {strides = array<i32>} : memref<14x128xf32, #tpu.memory_space<vmem>>, vector<2x128xf32>,
    %102 = vector.extract_strided_slice %91 {offsets = [0, 80], sizes = [2, 128], strides = [1, 1]} : vector<2x224xf32> to vector<2x128xf32>
    %c10_74 = arith.constant 10 : index
    %c0_75 = arith.constant 0 : index
    %103 = vector.load %arg14[%c10_74, %c0_75] : memref<14x128xf32, #tpu.memory_space<vmem>>, vector<2x128xf32>
    tpu.vector_store %arg14[%c10_74, %c0_75], %102 {strides = array<i32>} : memref<14x128xf32, #tpu.memory_space<vmem>>, vector<2x128xf32>,
    %104 = vector.extract_strided_slice %91 {offsets = [0, 96], sizes = [2, 128], strides = [1, 1]} : vector<2x224xf32> to vector<2x128xf32>
    %c12_76 = arith.constant 12 : index
    %c0_77 = arith.constant 0 : index
    %105 = vector.load %arg14[%c12_76, %c0_77] : memref<14x128xf32, #tpu.memory_space<vmem>>, vector<2x128xf32>
    tpu.vector_store %arg14[%c12_76, %c0_77], %104 {strides = array<i32>} : memref<14x128xf32, #tpu.memory_space<vmem>>, vector<2x128xf32>,
    %c0_78 = arith.constant 0 : index
    %c0_79 = arith.constant 0 : index
    %106 = vector.load %arg14[%c0_78, %c0_79] : memref<14x128xf32, #tpu.memory_space<vmem>>, vector<14x128xf32>
    %cst_80 = arith.constant dense<0.000000e+00> : vector<64x128xf32>
    %107 = tpu.matmul %0, %106, %cst_80 {dimension_numbers = #tpu.dot_dimension_numbers<[1], [0], [0], [1], [0, 0, 1, 1], [], []>} : vector<64x14xf32>, vector<14x128xf32>, vector<64x128xf32> -> vector<64x128xf32>
    %108 = vector.broadcast %1 : vector<64x1xf32> to vector<64x128xf32>
    %109 = arith.addf %107, %108 : vector<64x128xf32>
    %110 = vector.extract_strided_slice %109 {offsets = [0, 0], sizes = [32, 128], strides = [1, 1]} : vector<64x128xf32> to vector<32x128xf32>
    %111 = math.tanh %110 : vector<32x128xf32>
    %112 = vector.extract_strided_slice %109 {offsets = [32, 0], sizes = [32, 128], strides = [1, 1]} : vector<64x128xf32> to vector<32x128xf32>
    %113 = arith.negf %112 : vector<32x128xf32>
    %114 = math.exp %113 : vector<32x128xf32>
    %cst_81 = arith.constant 1.000000e+00 : f32
    %115 = vector.broadcast %cst_81 : f32 to vector<32x128xf32>
    %116 = arith.addf %115, %114 : vector<32x128xf32>
    %117 = arith.divf %115, %116 : vector<32x128xf32>
    %118 = arith.mulf %111, %117 : vector<32x128xf32>
    %cst_82 = arith.constant dense<0.000000e+00> : vector<32x256xf32>
    %119 = tpu.matmul %118, %2, %cst_82 {dimension_numbers = #tpu.dot_dimension_numbers<[1], [0], [0], [1], [0, 0, 1, 1], [], []>} : vector<32x128xf32>, vector<128x256xf32>, vector<32x256xf32> -> vector<32x256xf32>
    %120 = vector.extract_strided_slice %119 {offsets = [0, 0], sizes = [32, 128], strides = [1, 1]} : vector<32x256xf32> to vector<32x128xf32>
    %121 = vector.extract_strided_slice %119 {offsets = [0, 128], sizes = [32, 128], strides = [1, 1]} : vector<32x256xf32> to vector<32x128xf32>
    %122 = tpu.concatenate %120, %121 in 0 : vector<32x128xf32>, vector<32x128xf32> -> vector<64x128xf32>
    %cst_83 = arith.constant dense<0.000000e+00> : vector<32x128xf32>
    %123 = tpu.matmul %3, %122, %cst_83 {dimension_numbers = #tpu.dot_dimension_numbers<[1], [0], [0], [1], [0, 0, 1, 1], [], []>} : vector<32x64xf32>, vector<64x128xf32>, vector<32x128xf32> -> vector<32x128xf32>
    %124 = vector.broadcast %4 : vector<32x1xf32> to vector<32x128xf32>
    %125 = arith.addf %123, %124 : vector<32x128xf32>
    %cst_84 = arith.constant dense<0.000000e+00> : vector<32x2xf32>
    %126 = tpu.matmul %125, %5, %cst_84 {dimension_numbers = #tpu.dot_dimension_numbers<[1], [0], [0], [1], [0, 0, 1, 1], [], []>} : vector<32x128xf32>, vector<128x2xf32>, vector<32x2xf32> -> vector<32x2xf32>
    %127 = arith.mulf %125, %125 : vector<32x128xf32>
    %cst_85 = arith.constant dense<0.000000e+00> : vector<32x2xf32>
    %128 = tpu.matmul %127, %5, %cst_85 {dimension_numbers = #tpu.dot_dimension_numbers<[1], [0], [0], [1], [0, 0, 1, 1], [], []>} : vector<32x128xf32>, vector<128x2xf32>, vector<32x2xf32> -> vector<32x2xf32>
    %cst_86 = arith.constant dense<0.000000e+00> : vector<2xf32>
    %129 = vector.multi_reduction <add>, %126, %cst_86 [0] : vector<32x2xf32> to vector<2xf32>
    %130 = vector.shape_cast %129 : vector<2xf32> to vector<1x2xf32>
    %cst_87 = arith.constant 0.001953125 : f32
    %131 = vector.broadcast %cst_87 : f32 to vector<1x2xf32>
    %132 = arith.mulf %130, %131 : vector<1x2xf32>
    %cst_88 = arith.constant dense<0.000000e+00> : vector<2xf32>
    %133 = vector.multi_reduction <add>, %128, %cst_88 [0] : vector<32x2xf32> to vector<2xf32>
    %134 = vector.shape_cast %133 : vector<2xf32> to vector<1x2xf32>
    %cst_89 = arith.constant 0.001953125 : f32
    %135 = vector.broadcast %cst_89 : f32 to vector<1x2xf32>
    %136 = arith.mulf %134, %135 : vector<1x2xf32>
    %137 = arith.mulf %132, %132 : vector<1x2xf32>
    %138 = arith.subf %136, %137 : vector<1x2xf32>
    %cst_90 = arith.constant 9.99999974E-6 : f32
    %139 = vector.broadcast %cst_90 : f32 to vector<1x2xf32>
    %140 = arith.addf %138, %139 : vector<1x2xf32>
    %141 = math.rsqrt %140 : vector<1x2xf32>
    %cst_91 = arith.constant dense<0.000000e+00> : vector<1x128xf32>
    %142 = tpu.matmul %132, %6, %cst_91 {dimension_numbers = #tpu.dot_dimension_numbers<[1], [0], [0], [1], [0, 0, 1, 1], [], []>} : vector<1x2xf32>, vector<2x128xf32>, vector<1x128xf32> -> vector<1x128xf32>
    %cst_92 = arith.constant dense<0.000000e+00> : vector<1x128xf32>
    %143 = tpu.matmul %141, %6, %cst_92 {dimension_numbers = #tpu.dot_dimension_numbers<[1], [0], [0], [1], [0, 0, 1, 1], [], []>} : vector<1x2xf32>, vector<2x128xf32>, vector<1x128xf32> -> vector<1x128xf32>
    %144 = vector.broadcast %142 : vector<1x128xf32> to vector<32x128xf32>
    %145 = arith.subf %125, %144 : vector<32x128xf32>
    %146 = vector.broadcast %143 : vector<1x128xf32> to vector<32x128xf32>
    %147 = arith.mulf %145, %146 : vector<32x128xf32>
    %cst_93 = arith.constant dense<0.000000e+00> : vector<128x128xf32>
    %148 = tpu.matmul %7, %147, %cst_93 {dimension_numbers = #tpu.dot_dimension_numbers<[1], [0], [0], [1], [0, 0, 1, 1], [], []>} : vector<128x32xf32>, vector<32x128xf32>, vector<128x128xf32> -> vector<128x128xf32>
    %149 = vector.broadcast %8 : vector<128x1xf32> to vector<128x128xf32>
    %150 = arith.addf %148, %149 : vector<128x128xf32>
    %cst_94 = arith.constant 0.000000e+00 : f32
    %151 = vector.broadcast %cst_94 : f32 to vector<128x128xf32>
    %152 = arith.maximumf %150, %151 : vector<128x128xf32>
    %cst_95 = arith.constant dense<0.000000e+00> : vector<24x128xf32>
    %153 = tpu.matmul %9, %152, %cst_95 {dimension_numbers = #tpu.dot_dimension_numbers<[1], [0], [0], [1], [0, 0, 1, 1], [], []>} : vector<24x128xf32>, vector<128x128xf32>, vector<24x128xf32> -> vector<24x128xf32>
    %154 = vector.broadcast %10 : vector<24x1xf32> to vector<24x128xf32>
    %155 = arith.addf %153, %154 : vector<24x128xf32>
    %156 = vector.extract_strided_slice %155 {offsets = [12, 0], sizes = [12, 128], strides = [1, 1]} : vector<24x128xf32> to vector<12x128xf32>
    %157 = arith.addf %79, %156 : vector<12x128xf32>
    %158 = vector.extract_strided_slice %155 {offsets = [0, 0], sizes = [12, 128], strides = [1, 1]} : vector<24x128xf32> to vector<12x128xf32>
    %c0_96 = arith.constant 0 : index
    %c1_97 = arith.constant 1 : index
    %c0_98 = arith.constant 0 : index
    %c0_99 = arith.constant 0 : index
    %159 = vector.load %arg13[%c0_96, %c1_97, %c0_98, %c0_99] : memref<2x2x12x128xf32, #tpu.memory_space<vmem>>, vector<1x1x12x128xf32>
    %160 = vector.shape_cast %159 : vector<1x1x12x128xf32> to vector<12x128xf32>
    %161 = vector.shape_cast %158 : vector<12x128xf32> to vector<1x1x12x128xf32>
    tpu.vector_store %arg13[%c0_96, %c1_97, %c0_98, %c0_99], %161 {strides = array<i32>} : memref<2x2x12x128xf32, #tpu.memory_space<vmem>>, vector<1x1x12x128xf32>,
    %c1_100 = arith.constant 1 : index
    %c1_101 = arith.constant 1 : index
    %c0_102 = arith.constant 0 : index
    %c0_103 = arith.constant 0 : index
    %162 = vector.load %arg13[%c1_100, %c1_101, %c0_102, %c0_103] : memref<2x2x12x128xf32, #tpu.memory_space<vmem>>, vector<1x1x12x128xf32>
    %163 = vector.shape_cast %162 : vector<1x1x12x128xf32> to vector<12x128xf32>
    %164 = vector.shape_cast %157 : vector<12x128xf32> to vector<1x1x12x128xf32>
    tpu.vector_store %arg13[%c1_100, %c1_101, %c0_102, %c0_103], %164 {strides = array<i32>} : memref<2x2x12x128xf32, #tpu.memory_space<vmem>>, vector<1x1x12x128xf32>,
    return
  }
}

</mosaic_0001>

<llo_original>
// kernel: beats_ode_block_rollout.1
$region0: #{beats_ode_block_rollout.1}
  #allocation0 [shape = 'u32[]', space=smem, size = 0x4, offset = 0x4, fixed_abs, tag = 'smem constant byte address 0x4 - core index']
  #allocation1 [shape = 'u32[144,128]{1,0:T(1,128)}', space=vmem, size = 0x12000, scoped, tag = 'internal scratch']
  #allocation2 [shape = 'f32[14,128]{1,0:T(8,128)}', space=vmem, size = 0x2000, scoped, tag = 'scratch operand']
  %s0 = inlined_call_operand.vmem [shape: f32[2,2,224], index: 0, kind: input, shape index: {}]
  %s1 = inlined_call_operand.vmem [shape: f32[12,128], index: 1, kind: input, shape index: {}]
  %s2 = inlined_call_operand.vmem [shape: f32[64,14], index: 2, kind: input, shape index: {}]
  %s3 = inlined_call_operand.vmem [shape: f32[64,1], index: 3, kind: input, shape index: {}]
  %s4 = inlined_call_operand.vmem [shape: f32[128,256], index: 4, kind: input, shape index: {}]
  %s5 = inlined_call_operand.vmem [shape: f32[32,64], index: 5, kind: input, shape index: {}]
  %s6 = inlined_call_operand.hbm [shape: f32[32,1], index: 6, kind: input, shape index: {}]
  %s7 = inlined_call_operand.vmem [shape: f32[128,2], index: 7, kind: input, shape index: {}]
  %s8 = inlined_call_operand.vmem [shape: f32[2,128], index: 8, kind: input, shape index: {}]
  %s9 = inlined_call_operand.vmem [shape: f32[128,32], index: 9, kind: input, shape index: {}]
  %s10 = inlined_call_operand.vmem [shape: f32[128,1], index: 10, kind: input, shape index: {}]
  %s11 = inlined_call_operand.hbm [shape: f32[24,128], index: 11, kind: input, shape index: {}]
  %s12 = inlined_call_operand.hbm [shape: f32[24,1], index: 12, kind: input, shape index: {}]
  %s13 = inlined_call_operand.vmem [shape: f32[2,2,12,128], index: 13, kind: output, shape index: {}]
  %s14 = sld [smem:[#allocation0]]
  $region74: #{beats_ode_block_rollout.1} parent=0
    _
  %s16 = ssub.s32 1, %s14
  %s17 = scalar_select 0, %s16, %s14
  $region1: #{beats_ode_block_rollout.1} parent=0
    #allocation3 [shape = 'u8[16384]{0}', space=vmem, size = 0x4000, scoped, tag = 'input window, operand 6, single buffered']
    #allocation4 [shape = 's32[1]{0}', space=sflag, size = 0x4, scoped, tag = 'scoped memory for beats_ode_block_rollout.1']
    #allocation5 [shape = 'u8[12288]{0}', space=vmem, size = 0x3000, scoped, tag = 'input window, operand 11, single buffered']
    #allocation6 [shape = 's32[1]{0}', space=sflag, size = 0x4, scoped, tag = 'scoped memory for beats_ode_block_rollout.1']
    #allocation7 [shape = 'u8[12288]{0}', space=vmem, size = 0x3000, scoped, tag = 'input window, operand 12, single buffered']
    %18 = vsyncpa [#allocation4], 0
    %19 = vsyncpa [#allocation6], 0
    // Predicated region
    $region2: #{beats_ode_block_rollout.1} parent=1 // pred_check
      _
    $region3: #{beats_ode_block_rollout.1} parent=1 // pred_check_branch
      %21 = sbr.rel (0) target = $region5
    $region4: #{beats_ode_block_rollout.1} parent=1 // pred_region
      _
    $region5: #{beats_ode_block_rollout.1} parent=1 // pred_fallthru
      _
    // Predicated region
    $region6: #{beats_ode_block_rollout.1} parent=1 // pred_check
      _
    $region7: #{beats_ode_block_rollout.1} parent=1 // pred_check_branch
      %23 = sbr.rel (0) target = $region9
    $region8: #{beats_ode_block_rollout.1} parent=1 // pred_region
      _
    $region9: #{beats_ode_block_rollout.1} parent=1 // pred_fallthru
      _
    // Predicated region
    $region10: #{beats_ode_block_rollout.1} parent=1 // pred_check
      _
    $region11: #{beats_ode_block_rollout.1} parent=1 // pred_check_branch
      %25 = sbr.rel (0) target = $region13
    $region12: #{beats_ode_block_rollout.1} parent=1 // pred_region
      _
    $region13: #{beats_ode_block_rollout.1} parent=1 // pred_fallthru
      _
    // Predicated region
    $region14: #{beats_ode_block_rollout.1} parent=1 // pred_check
      _
    $region15: #{beats_ode_block_rollout.1} parent=1 // pred_check_branch
      %27 = sbr.rel (0) target = $region17
    $region16: #{beats_ode_block_rollout.1} parent=1 // pred_region
      _
    $region17: #{beats_ode_block_rollout.1} parent=1 // pred_fallthru
      _
    // Predicated region
    $region18: #{beats_ode_block_rollout.1} parent=1 // pred_check
      _
    $region19: #{beats_ode_block_rollout.1} parent=1 // pred_check_branch
      %29 = sbr.rel (0) target = $region21
    $region20: #{beats_ode_block_rollout.1} parent=1 // pred_region
      _
    $region21: #{beats_ode_block_rollout.1} parent=1 // pred_fallthru
      _
    // Predicated region
    $region22: #{beats_ode_block_rollout.1} parent=1 // pred_check
      _
    $region23: #{beats_ode_block_rollout.1} parent=1 // pred_check_branch
      %31 = sbr.rel (0) target = $region25
    $region24: #{beats_ode_block_rollout.1} parent=1 // pred_region
      _
    $region25: #{beats_ode_block_rollout.1} parent=1 // pred_fallthru
      _
    // Predicated region
    $region26: #{beats_ode_block_rollout.1} parent=1 // pred_check
      _
    $region27: #{beats_ode_block_rollout.1} parent=1 // pred_check_branch
      %33 = sbr.rel (0) target = $region29
    $region28: #{beats_ode_block_rollout.1} parent=1 // pred_region
      %s35 = ssub.s32 512, 512
      %36 = vsyncadd [#allocation4], %s35
      %s37 = sshll.u32 [#allocation3], 4
      %s38 = int_to_ptr.vmem [resolvable:$true] %s37
      %43 = dma.hbm_to_vmem [thread:$0]  %s6, 512, %s38, [#allocation4], 128, 128, 8
    $region29: #{beats_ode_block_rollout.1} parent=1 // pred_fallthru
      _
    // Predicated region
    $region30: #{beats_ode_block_rollout.1} parent=1 // pred_check
      _
    $region31: #{beats_ode_block_rollout.1} parent=1 // pred_check_branch
      %45 = sbr.rel (0) target = $region33
    $region32: #{beats_ode_block_rollout.1} parent=1 // pred_region
      _
    $region33: #{beats_ode_block_rollout.1} parent=1 // pred_fallthru
      _
    // Predicated region
    $region34: #{beats_ode_block_rollout.1} parent=1 // pred_check
      _
    $region35: #{beats_ode_block_rollout.1} parent=1 // pred_check_branch
      %47 = sbr.rel (0) target = $region37
    $region36: #{beats_ode_block_rollout.1} parent=1 // pred_region
      _
    $region37: #{beats_ode_block_rollout.1} parent=1 // pred_fallthru
      _
    // Predicated region
    $region38: #{beats_ode_block_rollout.1} parent=1 // pred_check
      _
    $region39: #{beats_ode_block_rollout.1} parent=1 // pred_check_branch
      %49 = sbr.rel (0) target = $region41
    $region40: #{beats_ode_block_rollout.1} parent=1 // pred_region
      _
    $region41: #{beats_ode_block_rollout.1} parent=1 // pred_fallthru
      _
    // Predicated region
    $region42: #{beats_ode_block_rollout.1} parent=1 // pred_check
      _
    $region43: #{beats_ode_block_rollout.1} parent=1 // pred_check_branch
      %51 = sbr.rel (0) target = $region45
    $region44: #{beats_ode_block_rollout.1} parent=1 // pred_region
      _
    $region45: #{beats_ode_block_rollout.1} parent=1 // pred_fallthru
      _
    // Predicated region
    $region46: #{beats_ode_block_rollout.1} parent=1 // pred_check
      _
    $region47: #{beats_ode_block_rollout.1} parent=1 // pred_check_branch
      %53 = sbr.rel (0) target = $region49
    $region48: #{beats_ode_block_rollout.1} parent=1 // pred_region
      %s55 = ssub.s32 384, 384
      %56 = vsyncadd [#allocation6], %s55
      %s57 = sshll.u32 [#allocation5], 4
      %s58 = int_to_ptr.vmem [resolvable:$true] %s57
      %63 = dma.hbm_to_vmem [thread:$0]  %s11, 384, %s58, [#allocation6], 128, 128, 8
    $region49: #{beats_ode_block_rollout.1} parent=1 // pred_fallthru
      _
    // Predicated region
    $region50: #{beats_ode_block_rollout.1} parent=1 // pred_check
      _
    $region51: #{beats_ode_block_rollout.1} parent=1 // pred_check_branch
      %65 = sbr.rel (0) target = $region53
    $region52: #{beats_ode_block_rollout.1} parent=1 // pred_region
      %s67 = ssub.s32 384, 384
      %68 = vsyncadd [#allocation6], %s67
      %s69 = sshll.u32 [#allocation7], 4
      %s70 = int_to_ptr.vmem [resolvable:$true] %s69
      %75 = dma.hbm_to_vmem [thread:$0]  %s12, 384, %s70, [#allocation6], 128, 128, 8
    $region53: #{beats_ode_block_rollout.1} parent=1 // pred_fallthru
      _
    // Predicated region
    $region54: #{beats_ode_block_rollout.1} parent=1 // pred_check
      _
    $region55: #{beats_ode_block_rollout.1} parent=1 // pred_check_branch
      %77 = sbr.rel (0) target = $region57
    $region56: #{beats_ode_block_rollout.1} parent=1 // pred_region
      %78 = dma.done [#allocation4], 512
    $region57: #{beats_ode_block_rollout.1} parent=1 // pred_fallthru
      _
    // Predicated region
    $region58: #{beats_ode_block_rollout.1} parent=1 // pred_check
      _
    $region59: #{beats_ode_block_rollout.1} parent=1 // pred_check_branch
      %80 = sbr.rel (0) target = $region61
    $region60: #{beats_ode_block_rollout.1} parent=1 // pred_region
      %81 = dma.done [#allocation6], 384
    $region61: #{beats_ode_block_rollout.1} parent=1 // pred_fallthru
      _
    // Predicated region
    $region62: #{beats_ode_block_rollout.1} parent=1 // pred_check
      _
    $region63: #{beats_ode_block_rollout.1} parent=1 // pred_check_branch
      %83 = sbr.rel (0) target = $region65
    $region64: #{beats_ode_block_rollout.1} parent=1 // pred_region
      %84 = dma.done [#allocation6], 384
    $region65: #{beats_ode_block_rollout.1} parent=1 // pred_fallthru
      _
    %v85 = vld [vmem:[%s2] sm:$0xff]
    %v86 = vld [vmem:[%s2 + $0x8] sm:$0xff]
    %v87 = vld [vmem:[%s2 + $0x10] sm:$0xff]
    %v88 = vld [vmem:[%s2 + $0x18] sm:$0xff]
    %v89 = vld [vmem:[%s2 + $0x20] sm:$0xff]
    %v90 = vld [vmem:[%s2 + $0x28] sm:$0xff]
    %v91 = vld [vmem:[%s2 + $0x30] sm:$0xff]
    %v92 = vld [vmem:[%s2 + $0x38] sm:$0xff]
    %v93 = vld [vmem:[%s3] sm:$0xff]
    %v94 = vld [vmem:[%s3 + $0x8] sm:$0xff]
    %v95 = vld [vmem:[%s3 + $0x10] sm:$0xff]
    %v96 = vld [vmem:[%s3 + $0x18] sm:$0xff]
    %v97 = vld [vmem:[%s3 + $0x20] sm:$0xff]
    %v98 = vld [vmem:[%s3 + $0x28] sm:$0xff]
    %v99 = vld [vmem:[%s3 + $0x30] sm:$0xff]
    %v100 = vld [vmem:[%s3 + $0x38] sm:$0xff]
    %v101 = vld [vmem:[%s4] sm:$0xff]
    %v102 = vld [vmem:[%s4 + $0x8] sm:$0xff]
    %v103 = vld [vmem:[%s4 + $0x10] sm:$0xff]
    %v104 = vld [vmem:[%s4 + $0x18] sm:$0xff]
    %v105 = vld [vmem:[%s4 + $0x20] sm:$0xff]
    %v106 = vld [vmem:[%s4 + $0x28] sm:$0xff]
    %v107 = vld [vmem:[%s4 + $0x30] sm:$0xff]
    %v108 = vld [vmem:[%s4 + $0x38] sm:$0xff]
    %v109 = vld [vmem:[%s4 + $0x40] sm:$0xff]
    %v110 = vld [vmem:[%s4 + $0x48] sm:$0xff]
    %v111 = vld [vmem:[%s4 + $0x50] sm:$0xff]
    %v112 = vld [vmem:[%s4 + $0x58] sm:$0xff]
    %v113 = vld [vmem:[%s4 + $0x60] sm:$0xff]
    %v114 = vld [vmem:[%s4 + $0x68] sm:$0xff]
    %v115 = vld [vmem:[%s4 + $0x70] sm:$0xff]
    %v116 = vld [vmem:[%s4 + $0x78] sm:$0xff]
    %v117 = vld [vmem:[%s4 + $0x80] sm:$0xff]
    %v118 = vld [vmem:[%s4 + $0x88] sm:$0xff]
    %v119 = vld [vmem:[%s4 + $0x90] sm:$0xff]
    %v120 = vld [vmem:[%s4 + $0x98] sm:$0xff]
    %v121 = vld [vmem:[%s4 + $0xa0] sm:$0xff]
    %v122 = vld [vmem:[%s4 + $0xa8] sm:$0xff]
    %v123 = vld [vmem:[%s4 + $0xb0] sm:$0xff]
    %v124 = vld [vmem:[%s4 + $0xb8] sm:$0xff]
    %v125 = vld [vmem:[%s4 + $0xc0] sm:$0xff]
    %v126 = vld [vmem:[%s4 + $0xc8] sm:$0xff]
    %v127 = vld [vmem:[%s4 + $0xd0] sm:$0xff]
    %v128 = vld [vmem:[%s4 + $0xd8] sm:$0xff]
    %v129 = vld [vmem:[%s4 + $0xe0] sm:$0xff]
    %v130 = vld [vmem:[%s4 + $0xe8] sm:$0xff]
    %v131 = vld [vmem:[%s4 + $0xf0] sm:$0xff]
    %v132 = vld [vmem:[%s4 + $0xf8] sm:$0xff]
    %v133 = vld [vmem:[%s5] sm:$0xff]
    %v134 = vld [vmem:[%s5 + $0x8] sm:$0xff]
    %v135 = vld [vmem:[%s5 + $0x10] sm:$0xff]
    %v136 = vld [vmem:[%s5 + $0x18] sm:$0xff]
    %v137 = vld [vmem:[#allocation3] sm:$0xff]
    %v138 = vld [vmem:[#allocation3 + $0x8] sm:$0xff]
    %v139 = vld [vmem:[#allocation3 + $0x10] sm:$0xff]
    %v140 = vld [vmem:[#allocation3 + $0x18] sm:$0xff]
    %v141 = vld [vmem:[%s7] sm:$0xff]
    %v142 = vld [vmem:[%s7 + $0x8] sm:$0xff]
    %v143 = vld [vmem:[%s7 + $0x10] sm:$0xff]
    %v144 = vld [vmem:[%s7 + $0x18] sm:$0xff]
    %v145 = vld [vmem:[%s7 + $0x20] sm:$0xff]
    %v146 = vld [vmem:[%s7 + $0x28] sm:$0xff]
    %v147 = vld [vmem:[%s7 + $0x30] sm:$0xff]
    %v148 = vld [vmem:[%s7 + $0x38] sm:$0xff]
    %v149 = vld [vmem:[%s7 + $0x40] sm:$0xff]
    %v150 = vld [vmem:[%s7 + $0x48] sm:$0xff]
    %v151 = vld [vmem:[%s7 + $0x50] sm:$0xff]
    %v152 = vld [vmem:[%s7 + $0x58] sm:$0xff]
    %v153 = vld [vmem:[%s7 + $0x60] sm:$0xff]
    %v154 = vld [vmem:[%s7 + $0x68] sm:$0xff]
    %v155 = vld [vmem:[%s7 + $0x70] sm:$0xff]
    %v156 = vld [vmem:[%s7 + $0x78] sm:$0xff]
    %v157 = vld [vmem:[%s8] sm:$0x3]
    %v158 = vld [vmem:[%s9] sm:$0xff]
    %v159 = vld [vmem:[%s9 + $0x8] sm:$0xff]
    %v160 = vld [vmem:[%s9 + $0x10] sm:$0xff]
    %v161 = vld [vmem:[%s9 + $0x18] sm:$0xff]
    %v162 = vld [vmem:[%s9 + $0x20] sm:$0xff]
    %v163 = vld [vmem:[%s9 + $0x28] sm:$0xff]
    %v164 = vld [vmem:[%s9 + $0x30] sm:$0xff]
    %v165 = vld [vmem:[%s9 + $0x38] sm:$0xff]
    %v166 = vld [vmem:[%s9 + $0x40] sm:$0xff]
    %v167 = vld [vmem:[%s9 + $0x48] sm:$0xff]
    %v168 = vld [vmem:[%s9 + $0x50] sm:$0xff]
    %v169 = vld [vmem:[%s9 + $0x58] sm:$0xff]
    %v170 = vld [vmem:[%s9 + $0x60] sm:$0xff]
    %v171 = vld [vmem:[%s9 + $0x68] sm:$0xff]
    %v172 = vld [vmem:[%s9 + $0x70] sm:$0xff]
    %v173 = vld [vmem:[%s9 + $0x78] sm:$0xff]
    %v174 = vld [vmem:[%s10] sm:$0xff]
    %v175 = vld [vmem:[%s10 + $0x8] sm:$0xff]
    %v176 = vld [vmem:[%s10 + $0x10] sm:$0xff]
    %v177 = vld [vmem:[%s10 + $0x18] sm:$0xff]
    %v178 = vld [vmem:[%s10 + $0x20] sm:$0xff]
    %v179 = vld [vmem:[%s10 + $0x28] sm:$0xff]
    %v180 = vld [vmem:[%s10 + $0x30] sm:$0xff]
    %v181 = vld [vmem:[%s10 + $0x38] sm:$0xff]
    %v182 = vld [vmem:[%s10 + $0x40] sm:$0xff]
    %v183 = vld [vmem:[%s10 + $0x48] sm:$0xff]
    %v184 = vld [vmem:[%s10 + $0x50] sm:$0xff]
    %v185 = vld [vmem:[%s10 + $0x58] sm:$0xff]
    %v186 = vld [vmem:[%s10 + $0x60] sm:$0xff]
    %v187 = vld [vmem:[%s10 + $0x68] sm:$0xff]
    %v188 = vld [vmem:[%s10 + $0x70] sm:$0xff]
    %v189 = vld [vmem:[%s10 + $0x78] sm:$0xff]
    %v190 = vld [vmem:[#allocation5] sm:$0xff]
    %v191 = vld [vmem:[#allocation5 + $0x8] sm:$0xff]
    %v192 = vld [vmem:[#allocation5 + $0x10] sm:$0xff]
    %v193 = vld [vmem:[#allocation7] sm:$0xff]
    %v194 = vld [vmem:[#allocation7 + $0x8] sm:$0xff]
    %v195 = vld [vmem:[#allocation7 + $0x10] sm:$0xff]
    %v196 = vld [vmem:[%s1] sm:$0xff]
    %v197 = vld [vmem:[%s1 + $0x8] sm:$0xf]
    %v198 = vld [vmem:[%s0] sm:$0xf]
    %199 = vst [vmem:[#allocation2] sm:$0x3] %v198
    %v202 = vunpack.c.l.s4 1983009808
    %v203 = vunpack.c.0.s8 %v202
    %v204 = vlaneseq
    %v205 = vshrl.u32 %v204, 7
    %v206 = vsub.s32 %v203, %v205
    %v207 = vrot.slane %v198, %v206
    %v208 = vcombine.high %v207, %v207
    %209 = vrot.lane.b32.xlu0 %v207, 112
    %v210 = vpop.permute.xlu0 %209
    %211 = vrot.lane.b32.xlu0 %v208, 112
    %v212 = vpop.permute.xlu0 %211
    %vm213 = vcmask 916480
    %v214 = vsel %vm213, %v210, %v212
    %216 = vst [vmem:[#allocation2 + $0x2] sm:$0x3] %v214
    %217 = vrot.lane.b32.xlu0 %v207, 96
    %v218 = vpop.permute.xlu0 %217
    %219 = vrot.lane.b32.xlu0 %v208, 96
    %v220 = vpop.permute.xlu0 %219
    %vm221 = vcmask 785408
    %v222 = vsel %vm221, %v218, %v220
    %224 = vst [vmem:[#allocation2 + $0x4] sm:$0x3] %v222
    %225 = vrot.lane.b32.xlu0 %v207, 80
    %v226 = vpop.permute.xlu0 %225
    %227 = vrot.lane.b32.xlu0 %v208, 80
    %v228 = vpop.permute.xlu0 %227
    %vm229 = vcmask 654336
    %v230 = vsel %vm229, %v226, %v228
    %232 = vst [vmem:[#allocation2 + $0x6] sm:$0x3] %v230
    %233 = vrot.lane.b32.xlu0 %v207, 64
    %v234 = vpop.permute.xlu0 %233
    %235 = vrot.lane.b32.xlu0 %v208, 64
    %v236 = vpop.permute.xlu0 %235
    %vm237 = vcmask 523264
    %v238 = vsel %vm237, %v234, %v236
    %240 = vst [vmem:[#allocation2 + $0x8] sm:$0x3] %v238
    %241 = vrot.lane.b32.xlu0 %v207, 48
    %v242 = vpop.permute.xlu0 %241
    %243 = vrot.lane.b32.xlu0 %v208, 48
    %v244 = vpop.permute.xlu0 %243
    %vm245 = vcmask 392192
    %v246 = vsel %vm245, %v242, %v244
    %248 = vst [vmem:[#allocation2 + $0xa] sm:$0x3] %v246
    %249 = vrot.lane.b32.xlu0 %v207, 32
    %v250 = vpop.permute.xlu0 %249
    %251 = vrot.lane.b32.xlu0 %v208, 32
    %v252 = vpop.permute.xlu0 %251
    %vm253 = vcmask 261120
    %v254 = vsel %vm253, %v250, %v252
    %256 = vst [vmem:[#allocation2 + $0xc] sm:$0x3] %v254
    %v257 = vld [vmem:[#allocation2] sm:$0xff]
    %v258 = vld [vmem:[#allocation2 + $0x8] sm:$0x3f]
    %260 = vset.pattern.permute.xlu0 0
    %261 = vperm.xlu0 %260, %v93
    %v262 = vpop.permute.xlu0 %261
    %265 = vset.pattern.permute.xlu0 0
    %266 = vperm.xlu0 %265, %v94
    %v267 = vpop.permute.xlu0 %266
    %270 = vset.pattern.permute.xlu0 0
    %271 = vperm.xlu0 %270, %v95
    %v272 = vpop.permute.xlu0 %271
    %275 = vset.pattern.permute.xlu0 0
    %276 = vperm.xlu0 %275, %v96
    %v277 = vpop.permute.xlu0 %276
    %280 = vset.pattern.permute.xlu0 0
    %281 = vperm.xlu0 %280, %v97
    %v282 = vpop.permute.xlu0 %281
    %285 = vset.pattern.permute.xlu0 0
    %286 = vperm.xlu0 %285, %v98
    %v287 = vpop.permute.xlu0 %286
    %290 = vset.pattern.permute.xlu0 0
    %291 = vperm.xlu0 %290, %v99
    %v292 = vpop.permute.xlu0 %291
    %295 = vset.pattern.permute.xlu0 0
    %296 = vperm.xlu0 %295, %v100
    %v297 = vpop.permute.xlu0 %296
    %vm299 = vcmask 113664
    %v301 = vsel %vm299, %v85, 0
    %v304 = vsel %vm299, %v86, 0
    %v307 = vsel %vm299, %v87, 0
    %v310 = vsel %vm299, %v88, 0
    %v313 = vsel %vm299, %v89, 0
    %v316 = vsel %vm299, %v90, 0
    %v319 = vsel %vm299, %v91, 0
    %v322 = vsel %vm299, %v92, 0
    %vm324 = vcmask 1045504
    %v326 = vsel %vm324, %v258, 0
    %328 = vmatprep.subr.mxu0 0.0
    %329 = vmatpush1.msra.mxu0 0.0
    %330 = vmatprep.subr.mxu0 0.0
    %331 = vmatpush1.msra.mxu0 0.0
    %332 = vmatprep.subr.mxu0 0.0
    %333 = vmatpush1.msra.mxu0 0.0
    %334 = vmatprep.subr.mxu0 0.0
    %335 = vmatpush1.msra.mxu0 0.0
    %336 = vmatprep.subr.mxu0 0.0
    %337 = vmatpush1.msra.mxu0 0.0
    %338 = vmatprep.subr.mxu0 0.0
    %339 = vmatpush1.msra.mxu0 0.0
    %340 = vmatprep.subr.mxu0 0.0
    %341 = vmatpush1.msra.mxu0 0.0
    %342 = vmatprep.subr.mxu0 0.0
    %343 = vmatpush1.msra.mxu0 0.0
    %344 = vmatprep.subr.mxu0 0.0
    %345 = vmatpush1.msra.mxu0 0.0
    %346 = vmatprep.subr.mxu0 0.0
    %347 = vmatpush1.msra.mxu0 0.0
    %348 = vmatprep.subr.mxu0 0.0
    %349 = vmatpush1.msra.mxu0 0.0
    %350 = vmatprep.subr.mxu0 0.0
    %351 = vmatpush1.msra.mxu0 0.0
    %352 = vmatprep.subr.mxu0 0.0
    %353 = vmatpush1.msra.mxu0 0.0
    %354 = vmatprep.subr.mxu0 0.0
    %355 = vmatpush1.msra.mxu0 0.0
    %356 = vmatprep.subr.mxu0 0.0
    %357 = vmatpush1.msra.mxu0 %v326
    %358 = vmatprep.subr.mxu0 0.0
    %359 = vmatpush1.msra.mxu0 %v257
    %360 = vmatprep.subr.mxu0 0.0
    %361 = vmatpush2.msra.mxu0 0.0
    %362 = vmatprep.subr.mxu0 0.0
    %363 = vmatpush2.msra.mxu0 0.0
    %364 = vmatprep.subr.mxu0 0.0
    %365 = vmatpush2.msra.mxu0 0.0
    %366 = vmatprep.subr.mxu0 0.0
    %367 = vmatpush2.msra.mxu0 0.0
    %368 = vmatprep.subr.mxu0 0.0
    %369 = vmatpush2.msra.mxu0 0.0
    %370 = vmatprep.subr.mxu0 0.0
    %371 = vmatpush2.msra.mxu0 0.0
    %372 = vmatprep.subr.mxu0 0.0
    %373 = vmatpush2.msra.mxu0 0.0
    %374 = vmatprep.subr.mxu0 0.0
    %375 = vmatpush2.msra.mxu0 0.0
    %376 = vmatprep.subr.mxu0 0.0
    %377 = vmatpush2.msra.mxu0 0.0
    %378 = vmatprep.subr.mxu0 0.0
    %379 = vmatpush2.msra.mxu0 0.0
    %380 = vmatprep.subr.mxu0 0.0
    %381 = vmatpush2.msra.mxu0 0.0
    %382 = vmatprep.subr.mxu0 0.0
    %383 = vmatpush2.msra.mxu0 0.0
    %384 = vmatprep.subr.mxu0 0.0
    %385 = vmatpush2.msra.mxu0 0.0
    %386 = vmatprep.subr.mxu0 0.0
    %387 = vmatpush2.msra.mxu0 0.0
    %388 = vmatprep.subr.mxu0 0.0
    %389 = vmatpush2.msra.mxu0 0.0
    %390 = vmatprep.subr.mxu0 0.0
    %391 = vmatpush2.msra.mxu0 0.0
    %392 = vmatprep.mubr.f32.mxu0 0.0
    %393 = vmatmul.mubr.f32.gmra.mxu0 %v301
    %v394 = vpop.f32.mrf.mxu0
    %v395 = vadd.f32 %v262, %v394
    %v396 = vpop.f32.mrf.mxu0
    %397 = vmatprep.mubr.f32.mxu0 0.0
    %398 = vmatmul.mubr.f32.gmra.mxu0 %v304
    %v399 = vpop.f32.mrf.mxu0
    %v400 = vadd.f32 %v267, %v399
    %v401 = vpop.f32.mrf.mxu0
    %402 = vmatprep.mubr.f32.mxu0 0.0
    %403 = vmatmul.mubr.f32.gmra.mxu0 %v307
    %v404 = vpop.f32.mrf.mxu0
    %v405 = vadd.f32 %v272, %v404
    %v406 = vpop.f32.mrf.mxu0
    %407 = vmatprep.mubr.f32.mxu0 0.0
    %408 = vmatmul.mubr.f32.gmra.mxu0 %v310
    %v409 = vpop.f32.mrf.mxu0
    %v410 = vadd.f32 %v277, %v409
    %v411 = vpop.f32.mrf.mxu0
    %412 = vmatprep.mubr.f32.mxu0 0.0
    %413 = vmatmul.mubr.f32.gmra.mxu0 %v313
    %v414 = vpop.f32.mrf.mxu0
    %v415 = vadd.f32 %v282, %v414
    %v416 = vpop.f32.mrf.mxu0
    %417 = vmatprep.mubr.f32.mxu0 0.0
    %418 = vmatmul.mubr.f32.gmra.mxu0 %v316
    %v419 = vpop.f32.mrf.mxu0
    %v420 = vadd.f32 %v287, %v419
    %v421 = vpop.f32.mrf.mxu0
    %422 = vmatprep.mubr.f32.mxu0 0.0
    %423 = vmatmul.mubr.f32.gmra.mxu0 %v319
    %v424 = vpop.f32.mrf.mxu0
    %v425 = vadd.f32 %v292, %v424
    %v426 = vpop.f32.mrf.mxu0
    %427 = vmatprep.mubr.f32.mxu0 0.0
    %428 = vmatmul.mubr.f32.gmra.mxu0 %v322
    %v429 = vpop.f32.mrf.mxu0
    %v430 = vadd.f32 %v297, %v429
    %v431 = vpop.f32.mrf.mxu0
    %432 = vdwg.mxu0
    %v433 = vtanh.pop %v395
    %v434 = vtanh.pop %v400
    %v435 = vtanh.pop %v405
    %v436 = vtanh.pop %v410
    %v437 = vxor.u32 %v415, 2147483648
    %v438 = vxor.u32 %v420, 2147483648
    %v439 = vxor.u32 %v425, 2147483648
    %v440 = vxor.u32 %v430, 2147483648
    %v441 = vmul.f32 %v437, 1.442695
    %v442 = vpow.pop %v441
    %v443 = vmul.f32 %v438, 1.442695
    %v444 = vpow.pop %v443
    %v445 = vmul.f32 %v439, 1.442695
    %v446 = vpow.pop %v445
    %v447 = vmul.f32 %v440, 1.442695
    %v448 = vpow.pop %v447
    %v449 = vadd.f32 %v442, 1.0
    %v450 = vadd.f32 %v444, 1.0
    %v451 = vadd.f32 %v446, 1.0
    %v452 = vadd.f32 %v448, 1.0
    %v453 = vrcp.pop %v449
    %v454 = vmul.f32 1.0, %v453
    %v455 = vrcp.pop %v450
    %v456 = vmul.f32 1.0, %v455
    %v457 = vrcp.pop %v451
    %v458 = vmul.f32 1.0, %v457
    %v459 = vrcp.pop %v452
    %v460 = vmul.f32 1.0, %v459
    %v461 = vmul.f32 %v433, %v454
    %v462 = vmul.f32 %v434, %v456
    %v463 = vmul.f32 %v435, %v458
    %v464 = vmul.f32 %v436, %v460
    %465 = vmatprep.subr.mxu0 %v132
    %466 = vmatpush1.msra.mxu0 %v131
    %467 = vmatprep.subr.mxu0 %v130
    %468 = vmatpush1.msra.mxu0 %v129
    %469 = vmatprep.subr.mxu0 %v128
    %470 = vmatpush1.msra.mxu0 %v127
    %471 = vmatprep.subr.mxu0 %v126
    %472 = vmatpush1.msra.mxu0 %v125
    %473 = vmatprep.subr.mxu0 %v124
    %474 = vmatpush1.msra.mxu0 %v123
    %475 = vmatprep.subr.mxu0 %v122
    %476 = vmatpush1.msra.mxu0 %v121
    %477 = vmatprep.subr.mxu0 %v120
    %478 = vmatpush1.msra.mxu0 %v119
    %479 = vmatprep.subr.mxu0 %v118
    %480 = vmatpush1.msra.mxu0 %v117
    %481 = vmatprep.subr.mxu0 %v116
    %482 = vmatpush1.msra.mxu0 %v115
    %483 = vmatprep.subr.mxu0 %v114
    %484 = vmatpush1.msra.mxu0 %v113
    %485 = vmatprep.subr.mxu0 %v112
    %486 = vmatpush1.msra.mxu0 %v111
    %487 = vmatprep.subr.mxu0 %v110
    %488 = vmatpush1.msra.mxu0 %v109
    %489 = vmatprep.subr.mxu0 %v108
    %490 = vmatpush1.msra.mxu0 %v107
    %491 = vmatprep.subr.mxu0 %v106
    %492 = vmatpush1.msra.mxu0 %v105
    %493 = vmatprep.subr.mxu0 %v104
    %494 = vmatpush1.msra.mxu0 %v103
    %495 = vmatprep.subr.mxu0 %v102
    %496 = vmatpush1.msra.mxu0 %v101
    %497 = vmatprep.subr.mxu0 0.0
    %498 = vmatpush2.msra.mxu0 0.0
    %499 = vmatprep.subr.mxu0 0.0
    %500 = vmatpush2.msra.mxu0 0.0
    %501 = vmatprep.subr.mxu0 0.0
    %502 = vmatpush2.msra.mxu0 0.0
    %503 = vmatprep.subr.mxu0 0.0
    %504 = vmatpush2.msra.mxu0 0.0
    %505 = vmatprep.subr.mxu0 0.0
    %506 = vmatpush2.msra.mxu0 0.0
    %507 = vmatprep.subr.mxu0 0.0
    %508 = vmatpush2.msra.mxu0 0.0
    %509 = vmatprep.subr.mxu0 0.0
    %510 = vmatpush2.msra.mxu0 0.0
    %511 = vmatprep.subr.mxu0 0.0
    %512 = vmatpush2.msra.mxu0 0.0
    %513 = vmatprep.subr.mxu0 0.0
    %514 = vmatpush2.msra.mxu0 0.0
    %515 = vmatprep.subr.mxu0 0.0
    %516 = vmatpush2.msra.mxu0 0.0
    %517 = vmatprep.subr.mxu0 0.0
    %518 = vmatpush2.msra.mxu0 0.0
    %519 = vmatprep.subr.mxu0 0.0
    %520 = vmatpush2.msra.mxu0 0.0
    %521 = vmatprep.subr.mxu0 0.0
    %522 = vmatpush2.msra.mxu0 0.0
    %523 = vmatprep.subr.mxu0 0.0
    %524 = vmatpush2.msra.mxu0 0.0
    %525 = vmatprep.subr.mxu0 0.0
    %526 = vmatpush2.msra.mxu0 0.0
    %527 = vmatprep.subr.mxu0 0.0
    %528 = vmatpush2.msra.mxu0 0.0
    %529 = vmatprep.mubr.f32.mxu0 0.0
    %530 = vmatmul.mubr.f32.gmra.mxu0 %v461
    %v531 = vpop.f32.mrf.mxu0
    %v532 = vadd.f32 0.0, %v531
    %v533 = vpop.f32.mrf.mxu0
    %v534 = vadd.f32 0.0, %v533
    %535 = vmatprep.mubr.f32.mxu0 0.0
    %536 = vmatmul.mubr.f32.gmra.mxu0 %v462
    %v537 = vpop.f32.mrf.mxu0
    %v538 = vadd.f32 0.0, %v537
    %v539 = vpop.f32.mrf.mxu0
    %v540 = vadd.f32 0.0, %v539
    %541 = vmatprep.mubr.f32.mxu0 0.0
    %542 = vmatmul.mubr.f32.gmra.mxu0 %v463
    %v543 = vpop.f32.mrf.mxu0
    %v544 = vadd.f32 0.0, %v543
    %v545 = vpop.f32.mrf.mxu0
    %v546 = vadd.f32 0.0, %v545
    %547 = vmatprep.mubr.f32.mxu0 0.0
    %548 = vmatmul.mubr.f32.gmra.mxu0 %v464
    %v549 = vpop.f32.mrf.mxu0
    %v550 = vadd.f32 0.0, %v549
    %v551 = vpop.f32.mrf.mxu0
    %v552 = vadd.f32 0.0, %v551
    %553 = vdwg.mxu0
    %555 = vset.pattern.permute.xlu0 0
    %556 = vperm.xlu0 %555, %v137
    %v557 = vpop.permute.xlu0 %556
    %560 = vset.pattern.permute.xlu0 0
    %561 = vperm.xlu0 %560, %v138
    %v562 = vpop.permute.xlu0 %561
    %565 = vset.pattern.permute.xlu0 0
    %566 = vperm.xlu0 %565, %v139
    %v567 = vpop.permute.xlu0 %566
    %570 = vset.pattern.permute.xlu0 0
    %571 = vperm.xlu0 %570, %v140
    %v572 = vpop.permute.xlu0 %571
    %v575 = vsel %vm237, %v133, 0
    %v578 = vsel %vm237, %v134, 0
    %v581 = vsel %vm237, %v135, 0
    %v584 = vsel %vm237, %v136, 0
    %586 = vmatprep.subr.mxu0 0.0
    %587 = vmatpush1.msra.mxu0 0.0
    %588 = vmatprep.subr.mxu0 0.0
    %589 = vmatpush1.msra.mxu0 0.0
    %590 = vmatprep.subr.mxu0 0.0
    %591 = vmatpush1.msra.mxu0 0.0
    %592 = vmatprep.subr.mxu0 0.0
    %593 = vmatpush1.msra.mxu0 0.0
    %594 = vmatprep.subr.mxu0 0.0
    %595 = vmatpush1.msra.mxu0 0.0
    %596 = vmatprep.subr.mxu0 0.0
    %597 = vmatpush1.msra.mxu0 0.0
    %598 = vmatprep.subr.mxu0 0.0
    %599 = vmatpush1.msra.mxu0 0.0
    %600 = vmatprep.subr.mxu0 0.0
    %601 = vmatpush1.msra.mxu0 0.0
    %602 = vmatprep.subr.mxu0 0.0
    %603 = vmatpush1.msra.mxu0 %v552
    %604 = vmatprep.subr.mxu0 0.0
    %605 = vmatpush1.msra.mxu0 %v546
    %606 = vmatprep.subr.mxu0 0.0
    %607 = vmatpush1.msra.mxu0 %v540
    %608 = vmatprep.subr.mxu0 0.0
    %609 = vmatpush1.msra.mxu0 %v534
    %610 = vmatprep.subr.mxu0 0.0
    %611 = vmatpush1.msra.mxu0 %v550
    %612 = vmatprep.subr.mxu0 0.0
    %613 = vmatpush1.msra.mxu0 %v544
    %614 = vmatprep.subr.mxu0 0.0
    %615 = vmatpush1.msra.mxu0 %v538
    %616 = vmatprep.subr.mxu0 0.0
    %617 = vmatpush1.msra.mxu0 %v532
    %618 = vmatprep.subr.mxu0 0.0
    %619 = vmatpush2.msra.mxu0 0.0
    %620 = vmatprep.subr.mxu0 0.0
    %621 = vmatpush2.msra.mxu0 0.0
    %622 = vmatprep.subr.mxu0 0.0
    %623 = vmatpush2.msra.mxu0 0.0
    %624 = vmatprep.subr.mxu0 0.0
    %625 = vmatpush2.msra.mxu0 0.0
    %626 = vmatprep.subr.mxu0 0.0
    %627 = vmatpush2.msra.mxu0 0.0
    %628 = vmatprep.subr.mxu0 0.0
    %629 = vmatpush2.msra.mxu0 0.0
    %630 = vmatprep.subr.mxu0 0.0
    %631 = vmatpush2.msra.mxu0 0.0
    %632 = vmatprep.subr.mxu0 0.0
    %633 = vmatpush2.msra.mxu0 0.0
    %634 = vmatprep.subr.mxu0 0.0
    %635 = vmatpush2.msra.mxu0 0.0
    %636 = vmatprep.subr.mxu0 0.0
    %637 = vmatpush2.msra.mxu0 0.0
    %638 = vmatprep.subr.mxu0 0.0
    %639 = vmatpush2.msra.mxu0 0.0
    %640 = vmatprep.subr.mxu0 0.0
    %641 = vmatpush2.msra.mxu0 0.0
    %642 = vmatprep.subr.mxu0 0.0
    %643 = vmatpush2.msra.mxu0 0.0
    %644 = vmatprep.subr.mxu0 0.0
    %645 = vmatpush2.msra.mxu0 0.0
    %646 = vmatprep.subr.mxu0 0.0
    %647 = vmatpush2.msra.mxu0 0.0
    %648 = vmatprep.subr.mxu0 0.0
    %649 = vmatpush2.msra.mxu0 0.0
    %650 = vmatprep.mubr.f32.mxu0 0.0
    %651 = vmatmul.mubr.f32.gmra.mxu0 %v575
    %v652 = vpop.f32.mrf.mxu0
    %v653 = vadd.f32 %v557, %v652
    %v654 = vpop.f32.mrf.mxu0
    %655 = vmatprep.mubr.f32.mxu0 0.0
    %656 = vmatmul.mubr.f32.gmra.mxu0 %v578
    %v657 = vpop.f32.mrf.mxu0
    %v658 = vadd.f32 %v562, %v657
    %v659 = vpop.f32.mrf.mxu0
    %660 = vmatprep.mubr.f32.mxu0 0.0
    %661 = vmatmul.mubr.f32.gmra.mxu0 %v581
    %v662 = vpop.f32.mrf.mxu0
    %v663 = vadd.f32 %v567, %v662
    %v664 = vpop.f32.mrf.mxu0
    %665 = vmatprep.mubr.f32.mxu0 0.0
    %666 = vmatmul.mubr.f32.gmra.mxu0 %v584
    %v667 = vpop.f32.mrf.mxu0
    %v668 = vadd.f32 %v572, %v667
    %v669 = vpop.f32.mrf.mxu0
    %670 = vdwg.mxu0
    %671 = vmatprep.subr.mxu0 0.0
    %672 = vmatpush1.msra.mxu0 %v156
    %673 = vmatprep.subr.mxu0 0.0
    %674 = vmatpush1.msra.mxu0 %v155
    %675 = vmatprep.subr.mxu0 0.0
    %676 = vmatpush1.msra.mxu0 %v154
    %677 = vmatprep.subr.mxu0 0.0
    %678 = vmatpush1.msra.mxu0 %v153
    %679 = vmatprep.subr.mxu0 0.0
    %680 = vmatpush1.msra.mxu0 %v152
    %681 = vmatprep.subr.mxu0 0.0
    %682 = vmatpush1.msra.mxu0 %v151
    %683 = vmatprep.subr.mxu0 0.0
    %684 = vmatpush1.msra.mxu0 %v150
    %685 = vmatprep.subr.mxu0 0.0
    %686 = vmatpush1.msra.mxu0 %v149
    %687 = vmatprep.subr.mxu0 0.0
    %688 = vmatpush1.msra.mxu0 %v148
    %689 = vmatprep.subr.mxu0 0.0
    %690 = vmatpush1.msra.mxu0 %v147
    %691 = vmatprep.subr.mxu0 0.0
    %692 = vmatpush1.msra.mxu0 %v146
    %693 = vmatprep.subr.mxu0 0.0
    %694 = vmatpush1.msra.mxu0 %v145
    %695 = vmatprep.subr.mxu0 0.0
    %696 = vmatpush1.msra.mxu0 %v144
    %697 = vmatprep.subr.mxu0 0.0
    %698 = vmatpush1.msra.mxu0 %v143
    %699 = vmatprep.subr.mxu0 0.0
    %700 = vmatpush1.msra.mxu0 %v142
    %701 = vmatprep.subr.mxu0 0.0
    %702 = vmatpush1.msra.mxu0 %v141
    %703 = vmatprep.subr.mxu0 0.0
    %704 = vmatpush2.msra.mxu0 0.0
    %705 = vmatprep.subr.mxu0 0.0
    %706 = vmatpush2.msra.mxu0 0.0
    %707 = vmatprep.subr.mxu0 0.0
    %708 = vmatpush2.msra.mxu0 0.0
    %709 = vmatprep.subr.mxu0 0.0
    %710 = vmatpush2.msra.mxu0 0.0
    %711 = vmatprep.subr.mxu0 0.0
    %712 = vmatpush2.msra.mxu0 0.0
    %713 = vmatprep.subr.mxu0 0.0
    %714 = vmatpush2.msra.mxu0 0.0
    %715 = vmatprep.subr.mxu0 0.0
    %716 = vmatpush2.msra.mxu0 0.0
    %717 = vmatprep.subr.mxu0 0.0
    %718 = vmatpush2.msra.mxu0 0.0
    %719 = vmatprep.subr.mxu0 0.0
    %720 = vmatpush2.msra.mxu0 0.0
    %721 = vmatprep.subr.mxu0 0.0
    %722 = vmatpush2.msra.mxu0 0.0
    %723 = vmatprep.subr.mxu0 0.0
    %724 = vmatpush2.msra.mxu0 0.0
    %725 = vmatprep.subr.mxu0 0.0
    %726 = vmatpush2.msra.mxu0 0.0
    %727 = vmatprep.subr.mxu0 0.0
    %728 = vmatpush2.msra.mxu0 0.0
    %729 = vmatprep.subr.mxu0 0.0
    %730 = vmatpush2.msra.mxu0 0.0
    %731 = vmatprep.subr.mxu0 0.0
    %732 = vmatpush2.msra.mxu0 0.0
    %733 = vmatprep.subr.mxu0 0.0
    %734 = vmatpush2.msra.mxu0 0.0
    %735 = vmatprep.mubr.f32.mxu0 0.0
    %736 = vmatmul.mubr.f32.gmra.mxu0 %v653
    %v737 = vpop.f32.mrf.mxu0
    %v738 = vadd.f32 0.0, %v737
    %v739 = vpop.f32.mrf.mxu0
    %740 = vmatprep.mubr.f32.mxu0 0.0
    %741 = vmatmul.mubr.f32.gmra.mxu0 %v658
    %v742 = vpop.f32.mrf.mxu0
    %v743 = vadd.f32 0.0, %v742
    %v744 = vpop.f32.mrf.mxu0
    %745 = vmatprep.mubr.f32.mxu0 0.0
    %746 = vmatmul.mubr.f32.gmra.mxu0 %v663
    %v747 = vpop.f32.mrf.mxu0
    %v748 = vadd.f32 0.0, %v747
    %v749 = vpop.f32.mrf.mxu0
    %750 = vmatprep.mubr.f32.mxu0 0.0
    %751 = vmatmul.mubr.f32.gmra.mxu0 %v668
    %v752 = vpop.f32.mrf.mxu0
    %v753 = vadd.f32 0.0, %v752
    %v754 = vpop.f32.mrf.mxu0
    %755 = vdwg.mxu0
    %v756 = vmul.f32 %v653, %v653
    %v757 = vmul.f32 %v658, %v658
    %v758 = vmul.f32 %v663, %v663
    %v759 = vmul.f32 %v668, %v668
    %760 = vmatprep.subr.mxu0 0.0
    %761 = vmatpush1.msra.mxu0 %v156
    %762 = vmatprep.subr.mxu0 0.0
    %763 = vmatpush1.msra.mxu0 %v155
    %764 = vmatprep.subr.mxu0 0.0
    %765 = vmatpush1.msra.mxu0 %v154
    %766 = vmatprep.subr.mxu0 0.0
    %767 = vmatpush1.msra.mxu0 %v153
    %768 = vmatprep.subr.mxu0 0.0
    %769 = vmatpush1.msra.mxu0 %v152
    %770 = vmatprep.subr.mxu0 0.0
    %771 = vmatpush1.msra.mxu0 %v151
    %772 = vmatprep.subr.mxu0 0.0
    %773 = vmatpush1.msra.mxu0 %v150
    %774 = vmatprep.subr.mxu0 0.0
    %775 = vmatpush1.msra.mxu0 %v149
    %776 = vmatprep.subr.mxu0 0.0
    %777 = vmatpush1.msra.mxu0 %v148
    %778 = vmatprep.subr.mxu0 0.0
    %779 = vmatpush1.msra.mxu0 %v147
    %780 = vmatprep.subr.mxu0 0.0
    %781 = vmatpush1.msra.mxu0 %v146
    %782 = vmatprep.subr.mxu0 0.0
    %783 = vmatpush1.msra.mxu0 %v145
    %784 = vmatprep.subr.mxu0 0.0
    %785 = vmatpush1.msra.mxu0 %v144
    %786 = vmatprep.subr.mxu0 0.0
    %787 = vmatpush1.msra.mxu0 %v143
    %788 = vmatprep.subr.mxu0 0.0
    %789 = vmatpush1.msra.mxu0 %v142
    %790 = vmatprep.subr.mxu0 0.0
    %791 = vmatpush1.msra.mxu0 %v141
    %792 = vmatprep.subr.mxu0 0.0
    %793 = vmatpush2.msra.mxu0 0.0
    %794 = vmatprep.subr.mxu0 0.0
    %795 = vmatpush2.msra.mxu0 0.0
    %796 = vmatprep.subr.mxu0 0.0
    %797 = vmatpush2.msra.mxu0 0.0
    %798 = vmatprep.subr.mxu0 0.0
    %799 = vmatpush2.msra.mxu0 0.0
    %800 = vmatprep.subr.mxu0 0.0
    %801 = vmatpush2.msra.mxu0 0.0
    %802 = vmatprep.subr.mxu0 0.0
    %803 = vmatpush2.msra.mxu0 0.0
    %804 = vmatprep.subr.mxu0 0.0
    %805 = vmatpush2.msra.mxu0 0.0
    %806 = vmatprep.subr.mxu0 0.0
    %807 = vmatpush2.msra.mxu0 0.0
    %808 = vmatprep.subr.mxu0 0.0
    %809 = vmatpush2.msra.mxu0 0.0
    %810 = vmatprep.subr.mxu0 0.0
    %811 = vmatpush2.msra.mxu0 0.0
    %812 = vmatprep.subr.mxu0 0.0
    %813 = vmatpush2.msra.mxu0 0.0
    %814 = vmatprep.subr.mxu0 0.0
    %815 = vmatpush2.msra.mxu0 0.0
    %816 = vmatprep.subr.mxu0 0.0
    %817 = vmatpush2.msra.mxu0 0.0
    %818 = vmatprep.subr.mxu0 0.0
    %819 = vmatpush2.msra.mxu0 0.0
    %820 = vmatprep.subr.mxu0 0.0
    %821 = vmatpush2.msra.mxu0 0.0
    %822 = vmatprep.subr.mxu0 0.0
    %823 = vmatpush2.msra.mxu0 0.0
    %824 = vmatprep.mubr.f32.mxu0 0.0
    %825 = vmatmul.mubr.f32.gmra.mxu0 %v756
    %v826 = vpop.f32.mrf.mxu0
    %v827 = vadd.f32 0.0, %v826
    %v828 = vpop.f32.mrf.mxu0
    %829 = vmatprep.mubr.f32.mxu0 0.0
    %830 = vmatmul.mubr.f32.gmra.mxu0 %v757
    %v831 = vpop.f32.mrf.mxu0
    %v832 = vadd.f32 0.0, %v831
    %v833 = vpop.f32.mrf.mxu0
    %834 = vmatprep.mubr.f32.mxu0 0.0
    %835 = vmatmul.mubr.f32.gmra.mxu0 %v758
    %v836 = vpop.f32.mrf.mxu0
    %v837 = vadd.f32 0.0, %v836
    %v838 = vpop.f32.mrf.mxu0
    %839 = vmatprep.mubr.f32.mxu0 0.0
    %840 = vmatmul.mubr.f32.gmra.mxu0 %v759
    %v841 = vpop.f32.mrf.mxu0
    %v842 = vadd.f32 0.0, %v841
    %v843 = vpop.f32.mrf.mxu0
    %844 = vdwg.mxu0
    %vm845 = vcmask 15360
    %v846 = vsel %vm845, %v738, 0.0
    %v847 = vsel %vm845, %v743, 0.0
    %v848 = vadd.f32 %v846, %v847
    %v849 = vsel %vm845, %v748, 0.0
    %v850 = vadd.f32 %v848, %v849
    %v851 = vsel %vm845, %v753, 0.0
    %v852 = vadd.f32 %v850, %v851
    %v853 = vrot.slane %v852, 4
    %v854 = vadd.f32 %v852, %v853
    %v855 = vrot.slane %v854, 2
    %v856 = vadd.f32 %v854, %v855
    %v857 = vrot.slane %v856, 1
    %v858 = vadd.f32 %v856, %v857
    %v859 = vmul.f32 %v858, 0.001953125
    %v860 = vsel %vm845, %v827, 0.0
    %v861 = vsel %vm845, %v832, 0.0
    %v862 = vadd.f32 %v860, %v861
    %v863 = vsel %vm845, %v837, 0.0
    %v864 = vadd.f32 %v862, %v863
    %v865 = vsel %vm845, %v842, 0.0
    %v866 = vadd.f32 %v864, %v865
    %v867 = vrot.slane %v866, 4
    %v868 = vadd.f32 %v866, %v867
    %v869 = vrot.slane %v868, 2
    %v870 = vadd.f32 %v868, %v869
    %v871 = vrot.slane %v870, 1
    %v872 = vadd.f32 %v870, %v871
    %v873 = vmul.f32 %v872, 0.001953125
    %v874 = vmul.f32 %v859, %v859
    %v875 = vsub.f32 %v873, %v874
    %v876 = vadd.f32 %v875, 1e-05
    %v877 = vrsqrt.pop %v876
    %v879 = vsel %vm845, %v859, 0
    %vm881 = vcmask 1041408
    %v883 = vsel %vm881, %v157, 0
    %885 = vmatprep.subr.mxu0 0.0
    %886 = vmatpush1.msra.mxu0 0.0
    %887 = vmatprep.subr.mxu0 0.0
    %888 = vmatpush1.msra.mxu0 0.0
    %889 = vmatprep.subr.mxu0 0.0
    %890 = vmatpush1.msra.mxu0 0.0
    %891 = vmatprep.subr.mxu0 0.0
    %892 = vmatpush1.msra.mxu0 0.0
    %893 = vmatprep.subr.mxu0 0.0
    %894 = vmatpush1.msra.mxu0 0.0
    %895 = vmatprep.subr.mxu0 0.0
    %896 = vmatpush1.msra.mxu0 0.0
    %897 = vmatprep.subr.mxu0 0.0
    %898 = vmatpush1.msra.mxu0 0.0
    %899 = vmatprep.subr.mxu0 0.0
    %900 = vmatpush1.msra.mxu0 0.0
    %901 = vmatprep.subr.mxu0 0.0
    %902 = vmatpush1.msra.mxu0 0.0
    %903 = vmatprep.subr.mxu0 0.0
    %904 = vmatpush1.msra.mxu0 0.0
    %905 = vmatprep.subr.mxu0 0.0
    %906 = vmatpush1.msra.mxu0 0.0
    %907 = vmatprep.subr.mxu0 0.0
    %908 = vmatpush1.msra.mxu0 0.0
    %909 = vmatprep.subr.mxu0 0.0
    %910 = vmatpush1.msra.mxu0 0.0
    %911 = vmatprep.subr.mxu0 0.0
    %912 = vmatpush1.msra.mxu0 0.0
    %913 = vmatprep.subr.mxu0 0.0
    %914 = vmatpush1.msra.mxu0 0.0
    %915 = vmatprep.subr.mxu0 0.0
    %916 = vmatpush1.msra.mxu0 %v883
    %917 = vmatprep.subr.mxu0 0.0
    %918 = vmatpush2.msra.mxu0 0.0
    %919 = vmatprep.subr.mxu0 0.0
    %920 = vmatpush2.msra.mxu0 0.0
    %921 = vmatprep.subr.mxu0 0.0
    %922 = vmatpush2.msra.mxu0 0.0
    %923 = vmatprep.subr.mxu0 0.0
    %924 = vmatpush2.msra.mxu0 0.0
    %925 = vmatprep.subr.mxu0 0.0
    %926 = vmatpush2.msra.mxu0 0.0
    %927 = vmatprep.subr.mxu0 0.0
    %928 = vmatpush2.msra.mxu0 0.0
    %929 = vmatprep.subr.mxu0 0.0
    %930 = vmatpush2.msra.mxu0 0.0
    %931 = vmatprep.subr.mxu0 0.0
    %932 = vmatpush2.msra.mxu0 0.0
    %933 = vmatprep.subr.mxu0 0.0
    %934 = vmatpush2.msra.mxu0 0.0
    %935 = vmatprep.subr.mxu0 0.0
    %936 = vmatpush2.msra.mxu0 0.0
    %937 = vmatprep.subr.mxu0 0.0
    %938 = vmatpush2.msra.mxu0 0.0
    %939 = vmatprep.subr.mxu0 0.0
    %940 = vmatpush2.msra.mxu0 0.0
    %941 = vmatprep.subr.mxu0 0.0
    %942 = vmatpush2.msra.mxu0 0.0
    %943 = vmatprep.subr.mxu0 0.0
    %944 = vmatpush2.msra.mxu0 0.0
    %945 = vmatprep.subr.mxu0 0.0
    %946 = vmatpush2.msra.mxu0 0.0
    %947 = vmatprep.subr.mxu0 0.0
    %948 = vmatpush2.msra.mxu0 0.0
    %949 = vmatprep.mubr.f32.mxu0 0.0
    %950 = vmatmul.mubr.f32.gmra.mxu0 %v879
    %v951 = vpop.f32.mrf.mxu0
    %v952 = vadd.f32 0.0, %v951
    %v953 = vpop.f32.mrf.mxu0
    %954 = vdwg.mxu0
    %v956 = vsel %vm845, %v877, 0
    %958 = vmatprep.subr.mxu0 0.0
    %959 = vmatpush1.msra.mxu0 0.0
    %960 = vmatprep.subr.mxu0 0.0
    %961 = vmatpush1.msra.mxu0 0.0
    %962 = vmatprep.subr.mxu0 0.0
    %963 = vmatpush1.msra.mxu0 0.0
    %964 = vmatprep.subr.mxu0 0.0
    %965 = vmatpush1.msra.mxu0 0.0
    %966 = vmatprep.subr.mxu0 0.0
    %967 = vmatpush1.msra.mxu0 0.0
    %968 = vmatprep.subr.mxu0 0.0
    %969 = vmatpush1.msra.mxu0 0.0
    %970 = vmatprep.subr.mxu0 0.0
    %971 = vmatpush1.msra.mxu0 0.0
    %972 = vmatprep.subr.mxu0 0.0
    %973 = vmatpush1.msra.mxu0 0.0
    %974 = vmatprep.subr.mxu0 0.0
    %975 = vmatpush1.msra.mxu0 0.0
    %976 = vmatprep.subr.mxu0 0.0
    %977 = vmatpush1.msra.mxu0 0.0
    %978 = vmatprep.subr.mxu0 0.0
    %979 = vmatpush1.msra.mxu0 0.0
    %980 = vmatprep.subr.mxu0 0.0
    %981 = vmatpush1.msra.mxu0 0.0
    %982 = vmatprep.subr.mxu0 0.0
    %983 = vmatpush1.msra.mxu0 0.0
    %984 = vmatprep.subr.mxu0 0.0
    %985 = vmatpush1.msra.mxu0 0.0
    %986 = vmatprep.subr.mxu0 0.0
    %987 = vmatpush1.msra.mxu0 0.0
    %988 = vmatprep.subr.mxu0 0.0
    %989 = vmatpush1.msra.mxu0 %v883
    %990 = vmatprep.subr.mxu0 0.0
    %991 = vmatpush2.msra.mxu0 0.0
    %992 = vmatprep.subr.mxu0 0.0
    %993 = vmatpush2.msra.mxu0 0.0
    %994 = vmatprep.subr.mxu0 0.0
    %995 = vmatpush2.msra.mxu0 0.0
    %996 = vmatprep.subr.mxu0 0.0
    %997 = vmatpush2.msra.mxu0 0.0
    %998 = vmatprep.subr.mxu0 0.0
    %999 = vmatpush2.msra.mxu0 0.0
    %1000 = vmatprep.subr.mxu0 0.0
    %1001 = vmatpush2.msra.mxu0 0.0
    %1002 = vmatprep.subr.mxu0 0.0
    %1003 = vmatpush2.msra.mxu0 0.0
    %1004 = vmatprep.subr.mxu0 0.0
    %1005 = vmatpush2.msra.mxu0 0.0
    %1006 = vmatprep.subr.mxu0 0.0
    %1007 = vmatpush2.msra.mxu0 0.0
    %1008 = vmatprep.subr.mxu0 0.0
    %1009 = vmatpush2.msra.mxu0 0.0
    %1010 = vmatprep.subr.mxu0 0.0
    %1011 = vmatpush2.msra.mxu0 0.0
    %1012 = vmatprep.subr.mxu0 0.0
    %1013 = vmatpush2.msra.mxu0 0.0
    %1014 = vmatprep.subr.mxu0 0.0
    %1015 = vmatpush2.msra.mxu0 0.0
    %1016 = vmatprep.subr.mxu0 0.0
    %1017 = vmatpush2.msra.mxu0 0.0
    %1018 = vmatprep.subr.mxu0 0.0
    %1019 = vmatpush2.msra.mxu0 0.0
    %1020 = vmatprep.subr.mxu0 0.0
    %1021 = vmatpush2.msra.mxu0 0.0
    %1022 = vmatprep.mubr.f32.mxu0 0.0
    %1023 = vmatmul.mubr.f32.gmra.mxu0 %v956
    %v1024 = vpop.f32.mrf.mxu0
    %v1025 = vadd.f32 0.0, %v1024
    %v1026 = vpop.f32.mrf.mxu0
    %1027 = vdwg.mxu0
    %v1028 = vlaneseq
    %v1029 = vshrl.u32 %v1028, 7
    %v1030 = vsub.s32 0, %v1029
    %v1031 = vrot.slane %v952, %v1030
    %v1032 = vsub.f32 %v653, %v1031
    %v1033 = vsub.f32 %v658, %v1031
    %v1034 = vsub.f32 %v663, %v1031
    %v1035 = vsub.f32 %v668, %v1031
    %v1036 = vlaneseq
    %v1037 = vshrl.u32 %v1036, 7
    %v1038 = vsub.s32 0, %v1037
    %v1039 = vrot.slane %v1025, %v1038
    %v1040 = vmul.f32 %v1032, %v1039
    %v1041 = vmul.f32 %v1033, %v1039
    %v1042 = vmul.f32 %v1034, %v1039
    %v1043 = vmul.f32 %v1035, %v1039
    %1045 = vset.pattern.permute.xlu0 0
    %1046 = vperm.xlu0 %1045, %v174
    %v1047 = vpop.permute.xlu0 %1046
    %1050 = vset.pattern.permute.xlu0 0
    %1051 = vperm.xlu0 %1050, %v175
    %v1052 = vpop.permute.xlu0 %1051
    %1055 = vset.pattern.permute.xlu0 0
    %1056 = vperm.xlu0 %1055, %v176
    %v1057 = vpop.permute.xlu0 %1056
    %1060 = vset.pattern.permute.xlu0 0
    %1061 = vperm.xlu0 %1060, %v177
    %v1062 = vpop.permute.xlu0 %1061
    %1065 = vset.pattern.permute.xlu0 0
    %1066 = vperm.xlu0 %1065, %v178
    %v1067 = vpop.permute.xlu0 %1066
    %1070 = vset.pattern.permute.xlu0 0
    %1071 = vperm.xlu0 %1070, %v179
    %v1072 = vpop.permute.xlu0 %1071
    %1075 = vset.pattern.permute.xlu0 0
    %1076 = vperm.xlu0 %1075, %v180
    %v1077 = vpop.permute.xlu0 %1076
    %1080 = vset.pattern.permute.xlu0 0
    %1081 = vperm.xlu0 %1080, %v181
    %v1082 = vpop.permute.xlu0 %1081
    %1085 = vset.pattern.permute.xlu0 0
    %1086 = vperm.xlu0 %1085, %v182
    %v1087 = vpop.permute.xlu0 %1086
    %1090 = vset.pattern.permute.xlu0 0
    %1091 = vperm.xlu0 %1090, %v183
    %v1092 = vpop.permute.xlu0 %1091
    %1095 = vset.pattern.permute.xlu0 0
    %1096 = vperm.xlu0 %1095, %v184
    %v1097 = vpop.permute.xlu0 %1096
    %1100 = vset.pattern.permute.xlu0 0
    %1101 = vperm.xlu0 %1100, %v185
    %v1102 = vpop.permute.xlu0 %1101
    %1105 = vset.pattern.permute.xlu0 0
    %1106 = vperm.xlu0 %1105, %v186
    %v1107 = vpop.permute.xlu0 %1106
    %1110 = vset.pattern.permute.xlu0 0
    %1111 = vperm.xlu0 %1110, %v187
    %v1112 = vpop.permute.xlu0 %1111
    %1115 = vset.pattern.permute.xlu0 0
    %1116 = vperm.xlu0 %1115, %v188
    %v1117 = vpop.permute.xlu0 %1116
    %1120 = vset.pattern.permute.xlu0 0
    %1121 = vperm.xlu0 %1120, %v189
    %v1122 = vpop.permute.xlu0 %1121
    %v1125 = vsel %vm253, %v158, 0
    %v1128 = vsel %vm253, %v159, 0
    %v1131 = vsel %vm253, %v160, 0
    %v1134 = vsel %vm253, %v161, 0
    %v1137 = vsel %vm253, %v162, 0
    %v1140 = vsel %vm253, %v163, 0
    %v1143 = vsel %vm253, %v164, 0
    %v1146 = vsel %vm253, %v165, 0
    %v1149 = vsel %vm253, %v166, 0
    %v1152 = vsel %vm253, %v167, 0
    %v1155 = vsel %vm253, %v168, 0
    %v1158 = vsel %vm253, %v169, 0
    %v1161 = vsel %vm253, %v170, 0
    %v1164 = vsel %vm253, %v171, 0
    %v1167 = vsel %vm253, %v172, 0
    %v1170 = vsel %vm253, %v173, 0
    %1172 = vmatprep.subr.mxu0 0.0
    %1173 = vmatpush1.msra.mxu0 0.0
    %1174 = vmatprep.subr.mxu0 0.0
    %1175 = vmatpush1.msra.mxu0 0.0
    %1176 = vmatprep.subr.mxu0 0.0
    %1177 = vmatpush1.msra.mxu0 0.0
    %1178 = vmatprep.subr.mxu0 0.0
    %1179 = vmatpush1.msra.mxu0 0.0
    %1180 = vmatprep.subr.mxu0 0.0
    %1181 = vmatpush1.msra.mxu0 0.0
    %1182 = vmatprep.subr.mxu0 0.0
    %1183 = vmatpush1.msra.mxu0 0.0
    %1184 = vmatprep.subr.mxu0 0.0
    %1185 = vmatpush1.msra.mxu0 0.0
    %1186 = vmatprep.subr.mxu0 0.0
    %1187 = vmatpush1.msra.mxu0 0.0
    %1188 = vmatprep.subr.mxu0 0.0
    %1189 = vmatpush1.msra.mxu0 0.0
    %1190 = vmatprep.subr.mxu0 0.0
    %1191 = vmatpush1.msra.mxu0 0.0
    %1192 = vmatprep.subr.mxu0 0.0
    %1193 = vmatpush1.msra.mxu0 0.0
    %1194 = vmatprep.subr.mxu0 0.0
    %1195 = vmatpush1.msra.mxu0 0.0
    %1196 = vmatprep.subr.mxu0 0.0
    %1197 = vmatpush1.msra.mxu0 %v1043
    %1198 = vmatprep.subr.mxu0 0.0
    %1199 = vmatpush1.msra.mxu0 %v1042
    %1200 = vmatprep.subr.mxu0 0.0
    %1201 = vmatpush1.msra.mxu0 %v1041
    %1202 = vmatprep.subr.mxu0 0.0
    %1203 = vmatpush1.msra.mxu0 %v1040
    %1204 = vmatprep.subr.mxu0 0.0
    %1205 = vmatpush2.msra.mxu0 0.0
    %1206 = vmatprep.subr.mxu0 0.0
    %1207 = vmatpush2.msra.mxu0 0.0
    %1208 = vmatprep.subr.mxu0 0.0
    %1209 = vmatpush2.msra.mxu0 0.0
    %1210 = vmatprep.subr.mxu0 0.0
    %1211 = vmatpush2.msra.mxu0 0.0
    %1212 = vmatprep.subr.mxu0 0.0
    %1213 = vmatpush2.msra.mxu0 0.0
    %1214 = vmatprep.subr.mxu0 0.0
    %1215 = vmatpush2.msra.mxu0 0.0
    %1216 = vmatprep.subr.mxu0 0.0
    %1217 = vmatpush2.msra.mxu0 0.0
    %1218 = vmatprep.subr.mxu0 0.0
    %1219 = vmatpush2.msra.mxu0 0.0
    %1220 = vmatprep.subr.mxu0 0.0
    %1221 = vmatpush2.msra.mxu0 0.0
    %1222 = vmatprep.subr.mxu0 0.0
    %1223 = vmatpush2.msra.mxu0 0.0
    %1224 = vmatprep.subr.mxu0 0.0
    %1225 = vmatpush2.msra.mxu0 0.0
    %1226 = vmatprep.subr.mxu0 0.0
    %1227 = vmatpush2.msra.mxu0 0.0
    %1228 = vmatprep.subr.mxu0 0.0
    %1229 = vmatpush2.msra.mxu0 0.0
    %1230 = vmatprep.subr.mxu0 0.0
    %1231 = vmatpush2.msra.mxu0 0.0
    %1232 = vmatprep.subr.mxu0 0.0
    %1233 = vmatpush2.msra.mxu0 0.0
    %1234 = vmatprep.subr.mxu0 0.0
    %1235 = vmatpush2.msra.mxu0 0.0
    %1236 = vmatprep.mubr.f32.mxu0 0.0
    %1237 = vmatmul.mubr.f32.gmra.mxu0 %v1125
    %v1238 = vpop.f32.mrf.mxu0
    %v1239 = vadd.f32 %v1047, %v1238
    %v1240 = vpop.f32.mrf.mxu0
    %1241 = vmatprep.mubr.f32.mxu0 0.0
    %1242 = vmatmul.mubr.f32.gmra.mxu0 %v1128
    %v1243 = vpop.f32.mrf.mxu0
    %v1244 = vadd.f32 %v1052, %v1243
    %v1245 = vpop.f32.mrf.mxu0
    %1246 = vmatprep.mubr.f32.mxu0 0.0
    %1247 = vmatmul.mubr.f32.gmra.mxu0 %v1131
    %v1248 = vpop.f32.mrf.mxu0
    %v1249 = vadd.f32 %v1057, %v1248
    %v1250 = vpop.f32.mrf.mxu0
    %1251 = vmatprep.mubr.f32.mxu0 0.0
    %1252 = vmatmul.mubr.f32.gmra.mxu0 %v1134
    %v1253 = vpop.f32.mrf.mxu0
    %v1254 = vadd.f32 %v1062, %v1253
    %v1255 = vpop.f32.mrf.mxu0
    %1256 = vmatprep.mubr.f32.mxu0 0.0
    %1257 = vmatmul.mubr.f32.gmra.mxu0 %v1137
    %v1258 = vpop.f32.mrf.mxu0
    %v1259 = vadd.f32 %v1067, %v1258
    %v1260 = vpop.f32.mrf.mxu0
    %1261 = vmatprep.mubr.f32.mxu0 0.0
    %1262 = vmatmul.mubr.f32.gmra.mxu0 %v1140
    %v1263 = vpop.f32.mrf.mxu0
    %v1264 = vadd.f32 %v1072, %v1263
    %v1265 = vpop.f32.mrf.mxu0
    %1266 = vmatprep.mubr.f32.mxu0 0.0
    %1267 = vmatmul.mubr.f32.gmra.mxu0 %v1143
    %v1268 = vpop.f32.mrf.mxu0
    %v1269 = vadd.f32 %v1077, %v1268
    %v1270 = vpop.f32.mrf.mxu0
    %1271 = vmatprep.mubr.f32.mxu0 0.0
    %1272 = vmatmul.mubr.f32.gmra.mxu0 %v1146
    %v1273 = vpop.f32.mrf.mxu0
    %v1274 = vadd.f32 %v1082, %v1273
    %v1275 = vpop.f32.mrf.mxu0
    %1276 = vmatprep.mubr.f32.mxu0 0.0
    %1277 = vmatmul.mubr.f32.gmra.mxu0 %v1149
    %v1278 = vpop.f32.mrf.mxu0
    %v1279 = vadd.f32 %v1087, %v1278
    %v1280 = vpop.f32.mrf.mxu0
    %1281 = vmatprep.mubr.f32.mxu0 0.0
    %1282 = vmatmul.mubr.f32.gmra.mxu0 %v1152
    %v1283 = vpop.f32.mrf.mxu0
    %v1284 = vadd.f32 %v1092, %v1283
    %v1285 = vpop.f32.mrf.mxu0
    %1286 = vmatprep.mubr.f32.mxu0 0.0
    %1287 = vmatmul.mubr.f32.gmra.mxu0 %v1155
    %v1288 = vpop.f32.mrf.mxu0
    %v1289 = vadd.f32 %v1097, %v1288
    %v1290 = vpop.f32.mrf.mxu0
    %1291 = vmatprep.mubr.f32.mxu0 0.0
    %1292 = vmatmul.mubr.f32.gmra.mxu0 %v1158
    %v1293 = vpop.f32.mrf.mxu0
    %v1294 = vadd.f32 %v1102, %v1293
    %v1295 = vpop.f32.mrf.mxu0
    %1296 = vmatprep.mubr.f32.mxu0 0.0
    %1297 = vmatmul.mubr.f32.gmra.mxu0 %v1161
    %v1298 = vpop.f32.mrf.mxu0
    %v1299 = vadd.f32 %v1107, %v1298
    %v1300 = vpop.f32.mrf.mxu0
    %1301 = vmatprep.mubr.f32.mxu0 0.0
    %1302 = vmatmul.mubr.f32.gmra.mxu0 %v1164
    %v1303 = vpop.f32.mrf.mxu0
    %v1304 = vadd.f32 %v1112, %v1303
    %v1305 = vpop.f32.mrf.mxu0
    %1306 = vmatprep.mubr.f32.mxu0 0.0
    %1307 = vmatmul.mubr.f32.gmra.mxu0 %v1167
    %v1308 = vpop.f32.mrf.mxu0
    %v1309 = vadd.f32 %v1117, %v1308
    %v1310 = vpop.f32.mrf.mxu0
    %1311 = vmatprep.mubr.f32.mxu0 0.0
    %1312 = vmatmul.mubr.f32.gmra.mxu0 %v1170
    %v1313 = vpop.f32.mrf.mxu0
    %v1314 = vadd.f32 %v1122, %v1313
    %v1315 = vpop.f32.mrf.mxu0
    %1316 = vdwg.mxu0
    %v1317 = vmax.f32 %v1239, 0.0
    %v1318 = vmax.f32 %v1244, 0.0
    %v1319 = vmax.f32 %v1249, 0.0
    %v1320 = vmax.f32 %v1254, 0.0
    %v1321 = vmax.f32 %v1259, 0.0
    %v1322 = vmax.f32 %v1264, 0.0
    %v1323 = vmax.f32 %v1269, 0.0
    %v1324 = vmax.f32 %v1274, 0.0
    %v1325 = vmax.f32 %v1279, 0.0
    %v1326 = vmax.f32 %v1284, 0.0
    %v1327 = vmax.f32 %v1289, 0.0
    %v1328 = vmax.f32 %v1294, 0.0
    %v1329 = vmax.f32 %v1299, 0.0
    %v1330 = vmax.f32 %v1304, 0.0
    %v1331 = vmax.f32 %v1309, 0.0
    %v1332 = vmax.f32 %v1314, 0.0
    %1334 = vset.pattern.permute.xlu0 0
    %1335 = vperm.xlu0 %1334, %v193
    %v1336 = vpop.permute.xlu0 %1335
    %1339 = vset.pattern.permute.xlu0 0
    %1340 = vperm.xlu0 %1339, %v194
    %v1341 = vpop.permute.xlu0 %1340
    %1344 = vset.pattern.permute.xlu0 0
    %1345 = vperm.xlu0 %1344, %v195
    %v1346 = vpop.permute.xlu0 %1345
    %1348 = vmatprep.subr.mxu0 0.0
    %1349 = vmatpush1.msra.mxu0 %v1332
    %1350 = vmatprep.subr.mxu0 0.0
    %1351 = vmatpush1.msra.mxu0 %v1331
    %1352 = vmatprep.subr.mxu0 0.0
    %1353 = vmatpush1.msra.mxu0 %v1330
    %1354 = vmatprep.subr.mxu0 0.0
    %1355 = vmatpush1.msra.mxu0 %v1329
    %1356 = vmatprep.subr.mxu0 0.0
    %1357 = vmatpush1.msra.mxu0 %v1328
    %1358 = vmatprep.subr.mxu0 0.0
    %1359 = vmatpush1.msra.mxu0 %v1327
    %1360 = vmatprep.subr.mxu0 0.0
    %1361 = vmatpush1.msra.mxu0 %v1326
    %1362 = vmatprep.subr.mxu0 0.0
    %1363 = vmatpush1.msra.mxu0 %v1325
    %1364 = vmatprep.subr.mxu0 0.0
    %1365 = vmatpush1.msra.mxu0 %v1324
    %1366 = vmatprep.subr.mxu0 0.0
    %1367 = vmatpush1.msra.mxu0 %v1323
    %1368 = vmatprep.subr.mxu0 0.0
    %1369 = vmatpush1.msra.mxu0 %v1322
    %1370 = vmatprep.subr.mxu0 0.0
    %1371 = vmatpush1.msra.mxu0 %v1321
    %1372 = vmatprep.subr.mxu0 0.0
    %1373 = vmatpush1.msra.mxu0 %v1320
    %1374 = vmatprep.subr.mxu0 0.0
    %1375 = vmatpush1.msra.mxu0 %v1319
    %1376 = vmatprep.subr.mxu0 0.0
    %1377 = vmatpush1.msra.mxu0 %v1318
    %1378 = vmatprep.subr.mxu0 0.0
    %1379 = vmatpush1.msra.mxu0 %v1317
    %1380 = vmatprep.subr.mxu0 0.0
    %1381 = vmatpush2.msra.mxu0 0.0
    %1382 = vmatprep.subr.mxu0 0.0
    %1383 = vmatpush2.msra.mxu0 0.0
    %1384 = vmatprep.subr.mxu0 0.0
    %1385 = vmatpush2.msra.mxu0 0.0
    %1386 = vmatprep.subr.mxu0 0.0
    %1387 = vmatpush2.msra.mxu0 0.0
    %1388 = vmatprep.subr.mxu0 0.0
    %1389 = vmatpush2.msra.mxu0 0.0
    %1390 = vmatprep.subr.mxu0 0.0
    %1391 = vmatpush2.msra.mxu0 0.0
    %1392 = vmatprep.subr.mxu0 0.0
    %1393 = vmatpush2.msra.mxu0 0.0
    %1394 = vmatprep.subr.mxu0 0.0
    %1395 = vmatpush2.msra.mxu0 0.0
    %1396 = vmatprep.subr.mxu0 0.0
    %1397 = vmatpush2.msra.mxu0 0.0
    %1398 = vmatprep.subr.mxu0 0.0
    %1399 = vmatpush2.msra.mxu0 0.0
    %1400 = vmatprep.subr.mxu0 0.0
    %1401 = vmatpush2.msra.mxu0 0.0
    %1402 = vmatprep.subr.mxu0 0.0
    %1403 = vmatpush2.msra.mxu0 0.0
    %1404 = vmatprep.subr.mxu0 0.0
    %1405 = vmatpush2.msra.mxu0 0.0
    %1406 = vmatprep.subr.mxu0 0.0
    %1407 = vmatpush2.msra.mxu0 0.0
    %1408 = vmatprep.subr.mxu0 0.0
    %1409 = vmatpush2.msra.mxu0 0.0
    %1410 = vmatprep.subr.mxu0 0.0
    %1411 = vmatpush2.msra.mxu0 0.0
    %1412 = vmatprep.mubr.f32.mxu0 0.0
    %1413 = vmatmul.mubr.f32.gmra.mxu0 %v190
    %v1414 = vpop.f32.mrf.mxu0
    %v1415 = vadd.f32 %v1336, %v1414
    %v1416 = vpop.f32.mrf.mxu0
    %1417 = vmatprep.mubr.f32.mxu0 0.0
    %1418 = vmatmul.mubr.f32.gmra.mxu0 %v191
    %v1419 = vpop.f32.mrf.mxu0
    %v1420 = vadd.f32 %v1341, %v1419
    %v1421 = vpop.f32.mrf.mxu0
    %1422 = vmatprep.mubr.f32.mxu0 0.0
    %1423 = vmatmul.mubr.f32.gmra.mxu0 %v192
    %v1424 = vpop.f32.mrf.mxu0
    %v1425 = vadd.f32 %v1346, %v1424
    %v1426 = vpop.f32.mrf.mxu0
    %1427 = vdwg.mxu0
    %vm1430 = vcmask 1043456
    %v1431 = vrot.slane %v1420, 4
    %v1432 = vrot.slane %v1425, 4
    %v1433 = vsel %vm1430, %v1431, %v1432
    %v1436 = vadd.f32 %v196, %v1433
    %v1437 = vadd.f32 %v197, %v1432
    %1438 = vst [vmem:[%s13] sm:$0xff] %v1415
    %1439 = vst [vmem:[%s13 + $0x8] sm:$0xf] %v1420
    %s1440 = scalar_lea.vmem %s13, 32
    %1441 = vst [vmem:[%s1440] sm:$0xff] %v1436
    %1442 = vst [vmem:[%s1440 + $0x8] sm:$0xf] %v1437
    %s1443 = scalar_lea.vmem %s0, 4
    %v1444 = vld [vmem:[%s1443] sm:$0xf]
    %v1445 = vld [vmem:[%s0] sm:$0xf]
    %v1446 = vsub.f32 %v1444, %v1445
    %1447 = vst [vmem:[#allocation2] sm:$0x3] %v1446
    %v1450 = vunpack.c.l.s4 1983009808
    %v1451 = vunpack.c.0.s8 %v1450
    %v1452 = vlaneseq
    %v1453 = vshrl.u32 %v1452, 7
    %v1454 = vsub.s32 %v1451, %v1453
    %v1455 = vrot.slane %v1446, %v1454
    %v1456 = vcombine.high %v1455, %v1455
    %1457 = vrot.lane.b32.xlu0 %v1455, 112
    %v1458 = vpop.permute.xlu0 %1457
    %1459 = vrot.lane.b32.xlu0 %v1456, 112
    %v1460 = vpop.permute.xlu0 %1459
    %v1461 = vsel %vm213, %v1458, %v1460
    %1463 = vst [vmem:[#allocation2 + $0x2] sm:$0x3] %v1461
    %1464 = vrot.lane.b32.xlu0 %v1455, 96
    %v1465 = vpop.permute.xlu0 %1464
    %1466 = vrot.lane.b32.xlu0 %v1456, 96
    %v1467 = vpop.permute.xlu0 %1466
    %v1468 = vsel %vm221, %v1465, %v1467
    %1470 = vst [vmem:[#allocation2 + $0x4] sm:$0x3] %v1468
    %1471 = vrot.lane.b32.xlu0 %v1455, 80
    %v1472 = vpop.permute.xlu0 %1471
    %1473 = vrot.lane.b32.xlu0 %v1456, 80
    %v1474 = vpop.permute.xlu0 %1473
    %v1475 = vsel %vm229, %v1472, %v1474
    %1477 = vst [vmem:[#allocation2 + $0x6] sm:$0x3] %v1475
    %1478 = vrot.lane.b32.xlu0 %v1455, 64
    %v1479 = vpop.permute.xlu0 %1478
    %1480 = vrot.lane.b32.xlu0 %v1456, 64
    %v1481 = vpop.permute.xlu0 %1480
    %v1482 = vsel %vm237, %v1479, %v1481
    %1484 = vst [vmem:[#allocation2 + $0x8] sm:$0x3] %v1482
    %1485 = vrot.lane.b32.xlu0 %v1455, 48
    %v1486 = vpop.permute.xlu0 %1485
    %1487 = vrot.lane.b32.xlu0 %v1456, 48
    %v1488 = vpop.permute.xlu0 %1487
    %v1489 = vsel %vm245, %v1486, %v1488
    %1491 = vst [vmem:[#allocation2 + $0xa] sm:$0x3] %v1489
    %1492 = vrot.lane.b32.xlu0 %v1455, 32
    %v1493 = vpop.permute.xlu0 %1492
    %1494 = vrot.lane.b32.xlu0 %v1456, 32
    %v1495 = vpop.permute.xlu0 %1494
    %v1496 = vsel %vm253, %v1493, %v1495
    %1498 = vst [vmem:[#allocation2 + $0xc] sm:$0x3] %v1496
    %v1499 = vld [vmem:[#allocation2] sm:$0xff]
    %v1500 = vld [vmem:[#allocation2 + $0x8] sm:$0x3f]
    %v1502 = vsel %vm324, %v1500, 0
    %1504 = vmatprep.subr.mxu0 0.0
    %1505 = vmatpush1.msra.mxu0 0.0
    %1506 = vmatprep.subr.mxu0 0.0
    %1507 = vmatpush1.msra.mxu0 0.0
    %1508 = vmatprep.subr.mxu0 0.0
    %1509 = vmatpush1.msra.mxu0 0.0
    %1510 = vmatprep.subr.mxu0 0.0
    %1511 = vmatpush1.msra.mxu0 0.0
    %1512 = vmatprep.subr.mxu0 0.0
    %1513 = vmatpush1.msra.mxu0 0.0
    %1514 = vmatprep.subr.mxu0 0.0
    %1515 = vmatpush1.msra.mxu0 0.0
    %1516 = vmatprep.subr.mxu0 0.0
    %1517 = vmatpush1.msra.mxu0 0.0
    %1518 = vmatprep.subr.mxu0 0.0
    %1519 = vmatpush1.msra.mxu0 0.0
    %1520 = vmatprep.subr.mxu0 0.0
    %1521 = vmatpush1.msra.mxu0 0.0
    %1522 = vmatprep.subr.mxu0 0.0
    %1523 = vmatpush1.msra.mxu0 0.0
    %1524 = vmatprep.subr.mxu0 0.0
    %1525 = vmatpush1.msra.mxu0 0.0
    %1526 = vmatprep.subr.mxu0 0.0
    %1527 = vmatpush1.msra.mxu0 0.0
    %1528 = vmatprep.subr.mxu0 0.0
    %1529 = vmatpush1.msra.mxu0 0.0
    %1530 = vmatprep.subr.mxu0 0.0
    %1531 = vmatpush1.msra.mxu0 0.0
    %1532 = vmatprep.subr.mxu0 0.0
    %1533 = vmatpush1.msra.mxu0 %v1502
    %1534 = vmatprep.subr.mxu0 0.0
    %1535 = vmatpush1.msra.mxu0 %v1499
    %1536 = vmatprep.subr.mxu0 0.0
    %1537 = vmatpush2.msra.mxu0 0.0
    %1538 = vmatprep.subr.mxu0 0.0
    %1539 = vmatpush2.msra.mxu0 0.0
    %1540 = vmatprep.subr.mxu0 0.0
    %1541 = vmatpush2.msra.mxu0 0.0
    %1542 = vmatprep.subr.mxu0 0.0
    %1543 = vmatpush2.msra.mxu0 0.0
    %1544 = vmatprep.subr.mxu0 0.0
    %1545 = vmatpush2.msra.mxu0 0.0
    %1546 = vmatprep.subr.mxu0 0.0
    %1547 = vmatpush2.msra.mxu0 0.0
    %1548 = vmatprep.subr.mxu0 0.0
    %1549 = vmatpush2.msra.mxu0 0.0
    %1550 = vmatprep.subr.mxu0 0.0
    %1551 = vmatpush2.msra.mxu0 0.0
    %1552 = vmatprep.subr.mxu0 0.0
    %1553 = vmatpush2.msra.mxu0 0.0
    %1554 = vmatprep.subr.mxu0 0.0
    %1555 = vmatpush2.msra.mxu0 0.0
    %1556 = vmatprep.subr.mxu0 0.0
    %1557 = vmatpush2.msra.mxu0 0.0
    %1558 = vmatprep.subr.mxu0 0.0
    %1559 = vmatpush2.msra.mxu0 0.0
    %1560 = vmatprep.subr.mxu0 0.0
    %1561 = vmatpush2.msra.mxu0 0.0
    %1562 = vmatprep.subr.mxu0 0.0
    %1563 = vmatpush2.msra.mxu0 0.0
    %1564 = vmatprep.subr.mxu0 0.0
    %1565 = vmatpush2.msra.mxu0 0.0
    %1566 = vmatprep.subr.mxu0 0.0
    %1567 = vmatpush2.msra.mxu0 0.0
    %1568 = vmatprep.mubr.f32.mxu0 0.0
    %1569 = vmatmul.mubr.f32.gmra.mxu0 %v301
    %v1570 = vpop.f32.mrf.mxu0
    %v1571 = vadd.f32 %v262, %v1570
    %v1572 = vpop.f32.mrf.mxu0
    %1573 = vmatprep.mubr.f32.mxu0 0.0
    %1574 = vmatmul.mubr.f32.gmra.mxu0 %v304
    %v1575 = vpop.f32.mrf.mxu0
    %v1576 = vadd.f32 %v267, %v1575
    %v1577 = vpop.f32.mrf.mxu0
    %1578 = vmatprep.mubr.f32.mxu0 0.0
    %1579 = vmatmul.mubr.f32.gmra.mxu0 %v307
    %v1580 = vpop.f32.mrf.mxu0
    %v1581 = vadd.f32 %v272, %v1580
    %v1582 = vpop.f32.mrf.mxu0
    %1583 = vmatprep.mubr.f32.mxu0 0.0
    %1584 = vmatmul.mubr.f32.gmra.mxu0 %v310
    %v1585 = vpop.f32.mrf.mxu0
    %v1586 = vadd.f32 %v277, %v1585
    %v1587 = vpop.f32.mrf.mxu0
    %1588 = vmatprep.mubr.f32.mxu0 0.0
    %1589 = vmatmul.mubr.f32.gmra.mxu0 %v313
    %v1590 = vpop.f32.mrf.mxu0
    %v1591 = vadd.f32 %v282, %v1590
    %v1592 = vpop.f32.mrf.mxu0
    %1593 = vmatprep.mubr.f32.mxu0 0.0
    %1594 = vmatmul.mubr.f32.gmra.mxu0 %v316
    %v1595 = vpop.f32.mrf.mxu0
    %v1596 = vadd.f32 %v287, %v1595
    %v1597 = vpop.f32.mrf.mxu0
    %1598 = vmatprep.mubr.f32.mxu0 0.0
    %1599 = vmatmul.mubr.f32.gmra.mxu0 %v319
    %v1600 = vpop.f32.mrf.mxu0
    %v1601 = vadd.f32 %v292, %v1600
    %v1602 = vpop.f32.mrf.mxu0
    %1603 = vmatprep.mubr.f32.mxu0 0.0
    %1604 = vmatmul.mubr.f32.gmra.mxu0 %v322
    %v1605 = vpop.f32.mrf.mxu0
    %v1606 = vadd.f32 %v297, %v1605
    %v1607 = vpop.f32.mrf.mxu0
    %1608 = vdwg.mxu0
    %v1609 = vtanh.pop %v1571
    %v1610 = vtanh.pop %v1576
    %v1611 = vtanh.pop %v1581
    %v1612 = vtanh.pop %v1586
    %v1613 = vxor.u32 %v1591, 2147483648
    %v1614 = vxor.u32 %v1596, 2147483648
    %v1615 = vxor.u32 %v1601, 2147483648
    %v1616 = vxor.u32 %v1606, 2147483648
    %v1617 = vmul.f32 %v1613, 1.442695
    %v1618 = vpow.pop %v1617
    %v1619 = vmul.f32 %v1614, 1.442695
    %v1620 = vpow.pop %v1619
    %v1621 = vmul.f32 %v1615, 1.442695
    %v1622 = vpow.pop %v1621
    %v1623 = vmul.f32 %v1616, 1.442695
    %v1624 = vpow.pop %v1623
    %v1625 = vadd.f32 %v1618, 1.0
    %v1626 = vadd.f32 %v1620, 1.0
    %v1627 = vadd.f32 %v1622, 1.0
    %v1628 = vadd.f32 %v1624, 1.0
    %v1629 = vrcp.pop %v1625
    %v1630 = vmul.f32 1.0, %v1629
    %v1631 = vrcp.pop %v1626
    %v1632 = vmul.f32 1.0, %v1631
    %v1633 = vrcp.pop %v1627
    %v1634 = vmul.f32 1.0, %v1633
    %v1635 = vrcp.pop %v1628
    %v1636 = vmul.f32 1.0, %v1635
    %v1637 = vmul.f32 %v1609, %v1630
    %v1638 = vmul.f32 %v1610, %v1632
    %v1639 = vmul.f32 %v1611, %v1634
    %v1640 = vmul.f32 %v1612, %v1636
    %1641 = vmatprep.subr.mxu0 %v132
    %1642 = vmatpush1.msra.mxu0 %v131
    %1643 = vmatprep.subr.mxu0 %v130
    %1644 = vmatpush1.msra.mxu0 %v129
    %1645 = vmatprep.subr.mxu0 %v128
    %1646 = vmatpush1.msra.mxu0 %v127
    %1647 = vmatprep.subr.mxu0 %v126
    %1648 = vmatpush1.msra.mxu0 %v125
    %1649 = vmatprep.subr.mxu0 %v124
    %1650 = vmatpush1.msra.mxu0 %v123
    %1651 = vmatprep.subr.mxu0 %v122
    %1652 = vmatpush1.msra.mxu0 %v121
    %1653 = vmatprep.subr.mxu0 %v120
    %1654 = vmatpush1.msra.mxu0 %v119
    %1655 = vmatprep.subr.mxu0 %v118
    %1656 = vmatpush1.msra.mxu0 %v117
    %1657 = vmatprep.subr.mxu0 %v116
    %1658 = vmatpush1.msra.mxu0 %v115
    %1659 = vmatprep.subr.mxu0 %v114
    %1660 = vmatpush1.msra.mxu0 %v113
    %1661 = vmatprep.subr.mxu0 %v112
    %1662 = vmatpush1.msra.mxu0 %v111
    %1663 = vmatprep.subr.mxu0 %v110
    %1664 = vmatpush1.msra.mxu0 %v109
    %1665 = vmatprep.subr.mxu0 %v108
    %1666 = vmatpush1.msra.mxu0 %v107
    %1667 = vmatprep.subr.mxu0 %v106
    %1668 = vmatpush1.msra.mxu0 %v105
    %1669 = vmatprep.subr.mxu0 %v104
    %1670 = vmatpush1.msra.mxu0 %v103
    %1671 = vmatprep.subr.mxu0 %v102
    %1672 = vmatpush1.msra.mxu0 %v101
    %1673 = vmatprep.subr.mxu0 0.0
    %1674 = vmatpush2.msra.mxu0 0.0
    %1675 = vmatprep.subr.mxu0 0.0
    %1676 = vmatpush2.msra.mxu0 0.0
    %1677 = vmatprep.subr.mxu0 0.0
    %1678 = vmatpush2.msra.mxu0 0.0
    %1679 = vmatprep.subr.mxu0 0.0
    %1680 = vmatpush2.msra.mxu0 0.0
    %1681 = vmatprep.subr.mxu0 0.0
    %1682 = vmatpush2.msra.mxu0 0.0
    %1683 = vmatprep.subr.mxu0 0.0
    %1684 = vmatpush2.msra.mxu0 0.0
    %1685 = vmatprep.subr.mxu0 0.0
    %1686 = vmatpush2.msra.mxu0 0.0
    %1687 = vmatprep.subr.mxu0 0.0
    %1688 = vmatpush2.msra.mxu0 0.0
    %1689 = vmatprep.subr.mxu0 0.0
    %1690 = vmatpush2.msra.mxu0 0.0
    %1691 = vmatprep.subr.mxu0 0.0
    %1692 = vmatpush2.msra.mxu0 0.0
    %1693 = vmatprep.subr.mxu0 0.0
    %1694 = vmatpush2.msra.mxu0 0.0
    %1695 = vmatprep.subr.mxu0 0.0
    %1696 = vmatpush2.msra.mxu0 0.0
    %1697 = vmatprep.subr.mxu0 0.0
    %1698 = vmatpush2.msra.mxu0 0.0
    %1699 = vmatprep.subr.mxu0 0.0
    %1700 = vmatpush2.msra.mxu0 0.0
    %1701 = vmatprep.subr.mxu0 0.0
    %1702 = vmatpush2.msra.mxu0 0.0
    %1703 = vmatprep.subr.mxu0 0.0
    %1704 = vmatpush2.msra.mxu0 0.0
    %1705 = vmatprep.mubr.f32.mxu0 0.0
    %1706 = vmatmul.mubr.f32.gmra.mxu0 %v1637
    %v1707 = vpop.f32.mrf.mxu0
    %v1708 = vadd.f32 0.0, %v1707
    %v1709 = vpop.f32.mrf.mxu0
    %v1710 = vadd.f32 0.0, %v1709
    %1711 = vmatprep.mubr.f32.mxu0 0.0
    %1712 = vmatmul.mubr.f32.gmra.mxu0 %v1638
    %v1713 = vpop.f32.mrf.mxu0
    %v1714 = vadd.f32 0.0, %v1713
    %v1715 = vpop.f32.mrf.mxu0
    %v1716 = vadd.f32 0.0, %v1715
    %1717 = vmatprep.mubr.f32.mxu0 0.0
    %1718 = vmatmul.mubr.f32.gmra.mxu0 %v1639
    %v1719 = vpop.f32.mrf.mxu0
    %v1720 = vadd.f32 0.0, %v1719
    %v1721 = vpop.f32.mrf.mxu0
    %v1722 = vadd.f32 0.0, %v1721
    %1723 = vmatprep.mubr.f32.mxu0 0.0
    %1724 = vmatmul.mubr.f32.gmra.mxu0 %v1640
    %v1725 = vpop.f32.mrf.mxu0
    %v1726 = vadd.f32 0.0, %v1725
    %v1727 = vpop.f32.mrf.mxu0
    %v1728 = vadd.f32 0.0, %v1727
    %1729 = vdwg.mxu0
    %1730 = vmatprep.subr.mxu0 0.0
    %1731 = vmatpush1.msra.mxu0 0.0
    %1732 = vmatprep.subr.mxu0 0.0
    %1733 = vmatpush1.msra.mxu0 0.0
    %1734 = vmatprep.subr.mxu0 0.0
    %1735 = vmatpush1.msra.mxu0 0.0
    %1736 = vmatprep.subr.mxu0 0.0
    %1737 = vmatpush1.msra.mxu0 0.0
    %1738 = vmatprep.subr.mxu0 0.0
    %1739 = vmatpush1.msra.mxu0 0.0
    %1740 = vmatprep.subr.mxu0 0.0
    %1741 = vmatpush1.msra.mxu0 0.0
    %1742 = vmatprep.subr.mxu0 0.0
    %1743 = vmatpush1.msra.mxu0 0.0
    %1744 = vmatprep.subr.mxu0 0.0
    %1745 = vmatpush1.msra.mxu0 0.0
    %1746 = vmatprep.subr.mxu0 0.0
    %1747 = vmatpush1.msra.mxu0 %v1728
    %1748 = vmatprep.subr.mxu0 0.0
    %1749 = vmatpush1.msra.mxu0 %v1722
    %1750 = vmatprep.subr.mxu0 0.0
    %1751 = vmatpush1.msra.mxu0 %v1716
    %1752 = vmatprep.subr.mxu0 0.0
    %1753 = vmatpush1.msra.mxu0 %v1710
    %1754 = vmatprep.subr.mxu0 0.0
    %1755 = vmatpush1.msra.mxu0 %v1726
    %1756 = vmatprep.subr.mxu0 0.0
    %1757 = vmatpush1.msra.mxu0 %v1720
    %1758 = vmatprep.subr.mxu0 0.0
    %1759 = vmatpush1.msra.mxu0 %v1714
    %1760 = vmatprep.subr.mxu0 0.0
    %1761 = vmatpush1.msra.mxu0 %v1708
    %1762 = vmatprep.subr.mxu0 0.0
    %1763 = vmatpush2.msra.mxu0 0.0
    %1764 = vmatprep.subr.mxu0 0.0
    %1765 = vmatpush2.msra.mxu0 0.0
    %1766 = vmatprep.subr.mxu0 0.0
    %1767 = vmatpush2.msra.mxu0 0.0
    %1768 = vmatprep.subr.mxu0 0.0
    %1769 = vmatpush2.msra.mxu0 0.0
    %1770 = vmatprep.subr.mxu0 0.0
    %1771 = vmatpush2.msra.mxu0 0.0
    %1772 = vmatprep.subr.mxu0 0.0
    %1773 = vmatpush2.msra.mxu0 0.0
    %1774 = vmatprep.subr.mxu0 0.0
    %1775 = vmatpush2.msra.mxu0 0.0
    %1776 = vmatprep.subr.mxu0 0.0
    %1777 = vmatpush2.msra.mxu0 0.0
    %1778 = vmatprep.subr.mxu0 0.0
    %1779 = vmatpush2.msra.mxu0 0.0
    %1780 = vmatprep.subr.mxu0 0.0
    %1781 = vmatpush2.msra.mxu0 0.0
    %1782 = vmatprep.subr.mxu0 0.0
    %1783 = vmatpush2.msra.mxu0 0.0
    %1784 = vmatprep.subr.mxu0 0.0
    %1785 = vmatpush2.msra.mxu0 0.0
    %1786 = vmatprep.subr.mxu0 0.0
    %1787 = vmatpush2.msra.mxu0 0.0
    %1788 = vmatprep.subr.mxu0 0.0
    %1789 = vmatpush2.msra.mxu0 0.0
    %1790 = vmatprep.subr.mxu0 0.0
    %1791 = vmatpush2.msra.mxu0 0.0
    %1792 = vmatprep.subr.mxu0 0.0
    %1793 = vmatpush2.msra.mxu0 0.0
    %1794 = vmatprep.mubr.f32.mxu0 0.0
    %1795 = vmatmul.mubr.f32.gmra.mxu0 %v575
    %v1796 = vpop.f32.mrf.mxu0
    %v1797 = vadd.f32 %v557, %v1796
    %v1798 = vpop.f32.mrf.mxu0
    %1799 = vmatprep.mubr.f32.mxu0 0.0
    %1800 = vmatmul.mubr.f32.gmra.mxu0 %v578
    %v1801 = vpop.f32.mrf.mxu0
    %v1802 = vadd.f32 %v562, %v1801
    %v1803 = vpop.f32.mrf.mxu0
    %1804 = vmatprep.mubr.f32.mxu0 0.0
    %1805 = vmatmul.mubr.f32.gmra.mxu0 %v581
    %v1806 = vpop.f32.mrf.mxu0
    %v1807 = vadd.f32 %v567, %v1806
    %v1808 = vpop.f32.mrf.mxu0
    %1809 = vmatprep.mubr.f32.mxu0 0.0
    %1810 = vmatmul.mubr.f32.gmra.mxu0 %v584
    %v1811 = vpop.f32.mrf.mxu0
    %v1812 = vadd.f32 %v572, %v1811
    %v1813 = vpop.f32.mrf.mxu0
    %1814 = vdwg.mxu0
    %1815 = vmatprep.subr.mxu0 0.0
    %1816 = vmatpush1.msra.mxu0 %v156
    %1817 = vmatprep.subr.mxu0 0.0
    %1818 = vmatpush1.msra.mxu0 %v155
    %1819 = vmatprep.subr.mxu0 0.0
    %1820 = vmatpush1.msra.mxu0 %v154
    %1821 = vmatprep.subr.mxu0 0.0
    %1822 = vmatpush1.msra.mxu0 %v153
    %1823 = vmatprep.subr.mxu0 0.0
    %1824 = vmatpush1.msra.mxu0 %v152
    %1825 = vmatprep.subr.mxu0 0.0
    %1826 = vmatpush1.msra.mxu0 %v151
    %1827 = vmatprep.subr.mxu0 0.0
    %1828 = vmatpush1.msra.mxu0 %v150
    %1829 = vmatprep.subr.mxu0 0.0
    %1830 = vmatpush1.msra.mxu0 %v149
    %1831 = vmatprep.subr.mxu0 0.0
    %1832 = vmatpush1.msra.mxu0 %v148
    %1833 = vmatprep.subr.mxu0 0.0
    %1834 = vmatpush1.msra.mxu0 %v147
    %1835 = vmatprep.subr.mxu0 0.0
    %1836 = vmatpush1.msra.mxu0 %v146
    %1837 = vmatprep.subr.mxu0 0.0
    %1838 = vmatpush1.msra.mxu0 %v145
    %1839 = vmatprep.subr.mxu0 0.0
    %1840 = vmatpush1.msra.mxu0 %v144
    %1841 = vmatprep.subr.mxu0 0.0
    %1842 = vmatpush1.msra.mxu0 %v143
    %1843 = vmatprep.subr.mxu0 0.0
    %1844 = vmatpush1.msra.mxu0 %v142
    %1845 = vmatprep.subr.mxu0 0.0
    %1846 = vmatpush1.msra.mxu0 %v141
    %1847 = vmatprep.subr.mxu0 0.0
    %1848 = vmatpush2.msra.mxu0 0.0
    %1849 = vmatprep.subr.mxu0 0.0
    %1850 = vmatpush2.msra.mxu0 0.0
    %1851 = vmatprep.subr.mxu0 0.0
    %1852 = vmatpush2.msra.mxu0 0.0
    %1853 = vmatprep.subr.mxu0 0.0
    %1854 = vmatpush2.msra.mxu0 0.0
    %1855 = vmatprep.subr.mxu0 0.0
    %1856 = vmatpush2.msra.mxu0 0.0
    %1857 = vmatprep.subr.mxu0 0.0
    %1858 = vmatpush2.msra.mxu0 0.0
    %1859 = vmatprep.subr.mxu0 0.0
    %1860 = vmatpush2.msra.mxu0 0.0
    %1861 = vmatprep.subr.mxu0 0.0
    %1862 = vmatpush2.msra.mxu0 0.0
    %1863 = vmatprep.subr.mxu0 0.0
    %1864 = vmatpush2.msra.mxu0 0.0
    %1865 = vmatprep.subr.mxu0 0.0
    %1866 = vmatpush2.msra.mxu0 0.0
    %1867 = vmatprep.subr.mxu0 0.0
    %1868 = vmatpush2.msra.mxu0 0.0
    %1869 = vmatprep.subr.mxu0 0.0
    %1870 = vmatpush2.msra.mxu0 0.0
    %1871 = vmatprep.subr.mxu0 0.0
    %1872 = vmatpush2.msra.mxu0 0.0
    %1873 = vmatprep.subr.mxu0 0.0
    %1874 = vmatpush2.msra.mxu0 0.0
    %1875 = vmatprep.subr.mxu0 0.0
    %1876 = vmatpush2.msra.mxu0 0.0
    %1877 = vmatprep.subr.mxu0 0.0
    %1878 = vmatpush2.msra.mxu0 0.0
    %1879 = vmatprep.mubr.f32.mxu0 0.0
    %1880 = vmatmul.mubr.f32.gmra.mxu0 %v1797
    %v1881 = vpop.f32.mrf.mxu0
    %v1882 = vadd.f32 0.0, %v1881
    %v1883 = vpop.f32.mrf.mxu0
    %1884 = vmatprep.mubr.f32.mxu0 0.0
    %1885 = vmatmul.mubr.f32.gmra.mxu0 %v1802
    %v1886 = vpop.f32.mrf.mxu0
    %v1887 = vadd.f32 0.0, %v1886
    %v1888 = vpop.f32.mrf.mxu0
    %1889 = vmatprep.mubr.f32.mxu0 0.0
    %1890 = vmatmul.mubr.f32.gmra.mxu0 %v1807
    %v1891 = vpop.f32.mrf.mxu0
    %v1892 = vadd.f32 0.0, %v1891
    %v1893 = vpop.f32.mrf.mxu0
    %1894 = vmatprep.mubr.f32.mxu0 0.0
    %1895 = vmatmul.mubr.f32.gmra.mxu0 %v1812
    %v1896 = vpop.f32.mrf.mxu0
    %v1897 = vadd.f32 0.0, %v1896
    %v1898 = vpop.f32.mrf.mxu0
    %1899 = vdwg.mxu0
    %v1900 = vmul.f32 %v1797, %v1797
    %v1901 = vmul.f32 %v1802, %v1802
    %v1902 = vmul.f32 %v1807, %v1807
    %v1903 = vmul.f32 %v1812, %v1812
    %1904 = vmatprep.subr.mxu0 0.0
    %1905 = vmatpush1.msra.mxu0 %v156
    %1906 = vmatprep.subr.mxu0 0.0
    %1907 = vmatpush1.msra.mxu0 %v155
    %1908 = vmatprep.subr.mxu0 0.0
    %1909 = vmatpush1.msra.mxu0 %v154
    %1910 = vmatprep.subr.mxu0 0.0
    %1911 = vmatpush1.msra.mxu0 %v153
    %1912 = vmatprep.subr.mxu0 0.0
    %1913 = vmatpush1.msra.mxu0 %v152
    %1914 = vmatprep.subr.mxu0 0.0
    %1915 = vmatpush1.msra.mxu0 %v151
    %1916 = vmatprep.subr.mxu0 0.0
    %1917 = vmatpush1.msra.mxu0 %v150
    %1918 = vmatprep.subr.mxu0 0.0
    %1919 = vmatpush1.msra.mxu0 %v149
    %1920 = vmatprep.subr.mxu0 0.0
    %1921 = vmatpush1.msra.mxu0 %v148
    %1922 = vmatprep.subr.mxu0 0.0
    %1923 = vmatpush1.msra.mxu0 %v147
    %1924 = vmatprep.subr.mxu0 0.0
    %1925 = vmatpush1.msra.mxu0 %v146
    %1926 = vmatprep.subr.mxu0 0.0
    %1927 = vmatpush1.msra.mxu0 %v145
    %1928 = vmatprep.subr.mxu0 0.0
    %1929 = vmatpush1.msra.mxu0 %v144
    %1930 = vmatprep.subr.mxu0 0.0
    %1931 = vmatpush1.msra.mxu0 %v143
    %1932 = vmatprep.subr.mxu0 0.0
    %1933 = vmatpush1.msra.mxu0 %v142
    %1934 = vmatprep.subr.mxu0 0.0
    %1935 = vmatpush1.msra.mxu0 %v141
    %1936 = vmatprep.subr.mxu0 0.0
    %1937 = vmatpush2.msra.mxu0 0.0
    %1938 = vmatprep.subr.mxu0 0.0
    %1939 = vmatpush2.msra.mxu0 0.0
    %1940 = vmatprep.subr.mxu0 0.0
    %1941 = vmatpush2.msra.mxu0 0.0
    %1942 = vmatprep.subr.mxu0 0.0
    %1943 = vmatpush2.msra.mxu0 0.0
    %1944 = vmatprep.subr.mxu0 0.0
    %1945 = vmatpush2.msra.mxu0 0.0
    %1946 = vmatprep.subr.mxu0 0.0
    %1947 = vmatpush2.msra.mxu0 0.0
    %1948 = vmatprep.subr.mxu0 0.0
    %1949 = vmatpush2.msra.mxu0 0.0
    %1950 = vmatprep.subr.mxu0 0.0
    %1951 = vmatpush2.msra.mxu0 0.0
    %1952 = vmatprep.subr.mxu0 0.0
    %1953 = vmatpush2.msra.mxu0 0.0
    %1954 = vmatprep.subr.mxu0 0.0
    %1955 = vmatpush2.msra.mxu0 0.0
    %1956 = vmatprep.subr.mxu0 0.0
    %1957 = vmatpush2.msra.mxu0 0.0
    %1958 = vmatprep.subr.mxu0 0.0
    %1959 = vmatpush2.msra.mxu0 0.0
    %1960 = vmatprep.subr.mxu0 0.0
    %1961 = vmatpush2.msra.mxu0 0.0
    %1962 = vmatprep.subr.mxu0 0.0
    %1963 = vmatpush2.msra.mxu0 0.0
    %1964 = vmatprep.subr.mxu0 0.0
    %1965 = vmatpush2.msra.mxu0 0.0
    %1966 = vmatprep.subr.mxu0 0.0
    %1967 = vmatpush2.msra.mxu0 0.0
    %1968 = vmatprep.mubr.f32.mxu0 0.0
    %1969 = vmatmul.mubr.f32.gmra.mxu0 %v1900
    %v1970 = vpop.f32.mrf.mxu0
    %v1971 = vadd.f32 0.0, %v1970
    %v1972 = vpop.f32.mrf.mxu0
    %1973 = vmatprep.mubr.f32.mxu0 0.0
    %1974 = vmatmul.mubr.f32.gmra.mxu0 %v1901
    %v1975 = vpop.f32.mrf.mxu0
    %v1976 = vadd.f32 0.0, %v1975
    %v1977 = vpop.f32.mrf.mxu0
    %1978 = vmatprep.mubr.f32.mxu0 0.0
    %1979 = vmatmul.mubr.f32.gmra.mxu0 %v1902
    %v1980 = vpop.f32.mrf.mxu0
    %v1981 = vadd.f32 0.0, %v1980
    %v1982 = vpop.f32.mrf.mxu0
    %1983 = vmatprep.mubr.f32.mxu0 0.0
    %1984 = vmatmul.mubr.f32.gmra.mxu0 %v1903
    %v1985 = vpop.f32.mrf.mxu0
    %v1986 = vadd.f32 0.0, %v1985
    %v1987 = vpop.f32.mrf.mxu0
    %1988 = vdwg.mxu0
    %v1989 = vsel %vm845, %v1882, 0.0
    %v1990 = vsel %vm845, %v1887, 0.0
    %v1991 = vadd.f32 %v1989, %v1990
    %v1992 = vsel %vm845, %v1892, 0.0
    %v1993 = vadd.f32 %v1991, %v1992
    %v1994 = vsel %vm845, %v1897, 0.0
    %v1995 = vadd.f32 %v1993, %v1994
    %v1996 = vrot.slane %v1995, 4
    %v1997 = vadd.f32 %v1995, %v1996
    %v1998 = vrot.slane %v1997, 2
    %v1999 = vadd.f32 %v1997, %v1998
    %v2000 = vrot.slane %v1999, 1
    %v2001 = vadd.f32 %v1999, %v2000
    %v2002 = vmul.f32 %v2001, 0.001953125
    %v2003 = vsel %vm845, %v1971, 0.0
    %v2004 = vsel %vm845, %v1976, 0.0
    %v2005 = vadd.f32 %v2003, %v2004
    %v2006 = vsel %vm845, %v1981, 0.0
    %v2007 = vadd.f32 %v2005, %v2006
    %v2008 = vsel %vm845, %v1986, 0.0
    %v2009 = vadd.f32 %v2007, %v2008
    %v2010 = vrot.slane %v2009, 4
    %v2011 = vadd.f32 %v2009, %v2010
    %v2012 = vrot.slane %v2011, 2
    %v2013 = vadd.f32 %v2011, %v2012
    %v2014 = vrot.slane %v2013, 1
    %v2015 = vadd.f32 %v2013, %v2014
    %v2016 = vmul.f32 %v2015, 0.001953125
    %v2017 = vmul.f32 %v2002, %v2002
    %v2018 = vsub.f32 %v2016, %v2017
    %v2019 = vadd.f32 %v2018, 1e-05
    %v2020 = vrsqrt.pop %v2019
    %v2022 = vsel %vm845, %v2002, 0
    %2024 = vmatprep.subr.mxu0 0.0
    %2025 = vmatpush1.msra.mxu0 0.0
    %2026 = vmatprep.subr.mxu0 0.0
    %2027 = vmatpush1.msra.mxu0 0.0
    %2028 = vmatprep.subr.mxu0 0.0
    %2029 = vmatpush1.msra.mxu0 0.0
    %2030 = vmatprep.subr.mxu0 0.0
    %2031 = vmatpush1.msra.mxu0 0.0
    %2032 = vmatprep.subr.mxu0 0.0
    %2033 = vmatpush1.msra.mxu0 0.0
    %2034 = vmatprep.subr.mxu0 0.0
    %2035 = vmatpush1.msra.mxu0 0.0
    %2036 = vmatprep.subr.mxu0 0.0
    %2037 = vmatpush1.msra.mxu0 0.0
    %2038 = vmatprep.subr.mxu0 0.0
    %2039 = vmatpush1.msra.mxu0 0.0
    %2040 = vmatprep.subr.mxu0 0.0
    %2041 = vmatpush1.msra.mxu0 0.0
    %2042 = vmatprep.subr.mxu0 0.0
    %2043 = vmatpush1.msra.mxu0 0.0
    %2044 = vmatprep.subr.mxu0 0.0
    %2045 = vmatpush1.msra.mxu0 0.0
    %2046 = vmatprep.subr.mxu0 0.0
    %2047 = vmatpush1.msra.mxu0 0.0
    %2048 = vmatprep.subr.mxu0 0.0
    %2049 = vmatpush1.msra.mxu0 0.0
    %2050 = vmatprep.subr.mxu0 0.0
    %2051 = vmatpush1.msra.mxu0 0.0
    %2052 = vmatprep.subr.mxu0 0.0
    %2053 = vmatpush1.msra.mxu0 0.0
    %2054 = vmatprep.subr.mxu0 0.0
    %2055 = vmatpush1.msra.mxu0 %v883
    %2056 = vmatprep.subr.mxu0 0.0
    %2057 = vmatpush2.msra.mxu0 0.0
    %2058 = vmatprep.subr.mxu0 0.0
    %2059 = vmatpush2.msra.mxu0 0.0
    %2060 = vmatprep.subr.mxu0 0.0
    %2061 = vmatpush2.msra.mxu0 0.0
    %2062 = vmatprep.subr.mxu0 0.0
    %2063 = vmatpush2.msra.mxu0 0.0
    %2064 = vmatprep.subr.mxu0 0.0
    %2065 = vmatpush2.msra.mxu0 0.0
    %2066 = vmatprep.subr.mxu0 0.0
    %2067 = vmatpush2.msra.mxu0 0.0
    %2068 = vmatprep.subr.mxu0 0.0
    %2069 = vmatpush2.msra.mxu0 0.0
    %2070 = vmatprep.subr.mxu0 0.0
    %2071 = vmatpush2.msra.mxu0 0.0
    %2072 = vmatprep.subr.mxu0 0.0
    %2073 = vmatpush2.msra.mxu0 0.0
    %2074 = vmatprep.subr.mxu0 0.0
    %2075 = vmatpush2.msra.mxu0 0.0
    %2076 = vmatprep.subr.mxu0 0.0
    %2077 = vmatpush2.msra.mxu0 0.0
    %2078 = vmatprep.subr.mxu0 0.0
    %2079 = vmatpush2.msra.mxu0 0.0
    %2080 = vmatprep.subr.mxu0 0.0
    %2081 = vmatpush2.msra.mxu0 0.0
    %2082 = vmatprep.subr.mxu0 0.0
    %2083 = vmatpush2.msra.mxu0 0.0
    %2084 = vmatprep.subr.mxu0 0.0
    %2085 = vmatpush2.msra.mxu0 0.0
    %2086 = vmatprep.subr.mxu0 0.0
    %2087 = vmatpush2.msra.mxu0 0.0
    %2088 = vmatprep.mubr.f32.mxu0 0.0
    %2089 = vmatmul.mubr.f32.gmra.mxu0 %v2022
    %v2090 = vpop.f32.mrf.mxu0
    %v2091 = vadd.f32 0.0, %v2090
    %v2092 = vpop.f32.mrf.mxu0
    %2093 = vdwg.mxu0
    %v2095 = vsel %vm845, %v2020, 0
    %2097 = vmatprep.subr.mxu0 0.0
    %2098 = vmatpush1.msra.mxu0 0.0
    %2099 = vmatprep.subr.mxu0 0.0
    %2100 = vmatpush1.msra.mxu0 0.0
    %2101 = vmatprep.subr.mxu0 0.0
    %2102 = vmatpush1.msra.mxu0 0.0
    %2103 = vmatprep.subr.mxu0 0.0
    %2104 = vmatpush1.msra.mxu0 0.0
    %2105 = vmatprep.subr.mxu0 0.0
    %2106 = vmatpush1.msra.mxu0 0.0
    %2107 = vmatprep.subr.mxu0 0.0
    %2108 = vmatpush1.msra.mxu0 0.0
    %2109 = vmatprep.subr.mxu0 0.0
    %2110 = vmatpush1.msra.mxu0 0.0
    %2111 = vmatprep.subr.mxu0 0.0
    %2112 = vmatpush1.msra.mxu0 0.0
    %2113 = vmatprep.subr.mxu0 0.0
    %2114 = vmatpush1.msra.mxu0 0.0
    %2115 = vmatprep.subr.mxu0 0.0
    %2116 = vmatpush1.msra.mxu0 0.0
    %2117 = vmatprep.subr.mxu0 0.0
    %2118 = vmatpush1.msra.mxu0 0.0
    %2119 = vmatprep.subr.mxu0 0.0
    %2120 = vmatpush1.msra.mxu0 0.0
    %2121 = vmatprep.subr.mxu0 0.0
    %2122 = vmatpush1.msra.mxu0 0.0
    %2123 = vmatprep.subr.mxu0 0.0
    %2124 = vmatpush1.msra.mxu0 0.0
    %2125 = vmatprep.subr.mxu0 0.0
    %2126 = vmatpush1.msra.mxu0 0.0
    %2127 = vmatprep.subr.mxu0 0.0
    %2128 = vmatpush1.msra.mxu0 %v883
    %2129 = vmatprep.subr.mxu0 0.0
    %2130 = vmatpush2.msra.mxu0 0.0
    %2131 = vmatprep.subr.mxu0 0.0
    %2132 = vmatpush2.msra.mxu0 0.0
    %2133 = vmatprep.subr.mxu0 0.0
    %2134 = vmatpush2.msra.mxu0 0.0
    %2135 = vmatprep.subr.mxu0 0.0
    %2136 = vmatpush2.msra.mxu0 0.0
    %2137 = vmatprep.subr.mxu0 0.0
    %2138 = vmatpush2.msra.mxu0 0.0
    %2139 = vmatprep.subr.mxu0 0.0
    %2140 = vmatpush2.msra.mxu0 0.0
    %2141 = vmatprep.subr.mxu0 0.0
    %2142 = vmatpush2.msra.mxu0 0.0
    %2143 = vmatprep.subr.mxu0 0.0
    %2144 = vmatpush2.msra.mxu0 0.0
    %2145 = vmatprep.subr.mxu0 0.0
    %2146 = vmatpush2.msra.mxu0 0.0
    %2147 = vmatprep.subr.mxu0 0.0
    %2148 = vmatpush2.msra.mxu0 0.0
    %2149 = vmatprep.subr.mxu0 0.0
    %2150 = vmatpush2.msra.mxu0 0.0
    %2151 = vmatprep.subr.mxu0 0.0
    %2152 = vmatpush2.msra.mxu0 0.0
    %2153 = vmatprep.subr.mxu0 0.0
    %2154 = vmatpush2.msra.mxu0 0.0
    %2155 = vmatprep.subr.mxu0 0.0
    %2156 = vmatpush2.msra.mxu0 0.0
    %2157 = vmatprep.subr.mxu0 0.0
    %2158 = vmatpush2.msra.mxu0 0.0
    %2159 = vmatprep.subr.mxu0 0.0
    %2160 = vmatpush2.msra.mxu0 0.0
    %2161 = vmatprep.mubr.f32.mxu0 0.0
    %2162 = vmatmul.mubr.f32.gmra.mxu0 %v2095
    %v2163 = vpop.f32.mrf.mxu0
    %v2164 = vadd.f32 0.0, %v2163
    %v2165 = vpop.f32.mrf.mxu0
    %2166 = vdwg.mxu0
    %v2167 = vlaneseq
    %v2168 = vshrl.u32 %v2167, 7
    %v2169 = vsub.s32 0, %v2168
    %v2170 = vrot.slane %v2091, %v2169
    %v2171 = vsub.f32 %v1797, %v2170
    %v2172 = vsub.f32 %v1802, %v2170
    %v2173 = vsub.f32 %v1807, %v2170
    %v2174 = vsub.f32 %v1812, %v2170
    %v2175 = vlaneseq
    %v2176 = vshrl.u32 %v2175, 7
    %v2177 = vsub.s32 0, %v2176
    %v2178 = vrot.slane %v2164, %v2177
    %v2179 = vmul.f32 %v2171, %v2178
    %v2180 = vmul.f32 %v2172, %v2178
    %v2181 = vmul.f32 %v2173, %v2178
    %v2182 = vmul.f32 %v2174, %v2178
    %2183 = vmatprep.subr.mxu0 0.0
    %2184 = vmatpush1.msra.mxu0 0.0
    %2185 = vmatprep.subr.mxu0 0.0
    %2186 = vmatpush1.msra.mxu0 0.0
    %2187 = vmatprep.subr.mxu0 0.0
    %2188 = vmatpush1.msra.mxu0 0.0
    %2189 = vmatprep.subr.mxu0 0.0
    %2190 = vmatpush1.msra.mxu0 0.0
    %2191 = vmatprep.subr.mxu0 0.0
    %2192 = vmatpush1.msra.mxu0 0.0
    %2193 = vmatprep.subr.mxu0 0.0
    %2194 = vmatpush1.msra.mxu0 0.0
    %2195 = vmatprep.subr.mxu0 0.0
    %2196 = vmatpush1.msra.mxu0 0.0
    %2197 = vmatprep.subr.mxu0 0.0
    %2198 = vmatpush1.msra.mxu0 0.0
    %2199 = vmatprep.subr.mxu0 0.0
    %2200 = vmatpush1.msra.mxu0 0.0
    %2201 = vmatprep.subr.mxu0 0.0
    %2202 = vmatpush1.msra.mxu0 0.0
    %2203 = vmatprep.subr.mxu0 0.0
    %2204 = vmatpush1.msra.mxu0 0.0
    %2205 = vmatprep.subr.mxu0 0.0
    %2206 = vmatpush1.msra.mxu0 0.0
    %2207 = vmatprep.subr.mxu0 0.0
    %2208 = vmatpush1.msra.mxu0 %v2182
    %2209 = vmatprep.subr.mxu0 0.0
    %2210 = vmatpush1.msra.mxu0 %v2181
    %2211 = vmatprep.subr.mxu0 0.0
    %2212 = vmatpush1.msra.mxu0 %v2180
    %2213 = vmatprep.subr.mxu0 0.0
    %2214 = vmatpush1.msra.mxu0 %v2179
    %2215 = vmatprep.subr.mxu0 0.0
    %2216 = vmatpush2.msra.mxu0 0.0
    %2217 = vmatprep.subr.mxu0 0.0
    %2218 = vmatpush2.msra.mxu0 0.0
    %2219 = vmatprep.subr.mxu0 0.0
    %2220 = vmatpush2.msra.mxu0 0.0
    %2221 = vmatprep.subr.mxu0 0.0
    %2222 = vmatpush2.msra.mxu0 0.0
    %2223 = vmatprep.subr.mxu0 0.0
    %2224 = vmatpush2.msra.mxu0 0.0
    %2225 = vmatprep.subr.mxu0 0.0
    %2226 = vmatpush2.msra.mxu0 0.0
    %2227 = vmatprep.subr.mxu0 0.0
    %2228 = vmatpush2.msra.mxu0 0.0
    %2229 = vmatprep.subr.mxu0 0.0
    %2230 = vmatpush2.msra.mxu0 0.0
    %2231 = vmatprep.subr.mxu0 0.0
    %2232 = vmatpush2.msra.mxu0 0.0
    %2233 = vmatprep.subr.mxu0 0.0
    %2234 = vmatpush2.msra.mxu0 0.0
    %2235 = vmatprep.subr.mxu0 0.0
    %2236 = vmatpush2.msra.mxu0 0.0
    %2237 = vmatprep.subr.mxu0 0.0
    %2238 = vmatpush2.msra.mxu0 0.0
    %2239 = vmatprep.subr.mxu0 0.0
    %2240 = vmatpush2.msra.mxu0 0.0
    %2241 = vmatprep.subr.mxu0 0.0
    %2242 = vmatpush2.msra.mxu0 0.0
    %2243 = vmatprep.subr.mxu0 0.0
    %2244 = vmatpush2.msra.mxu0 0.0
    %2245 = vmatprep.subr.mxu0 0.0
    %2246 = vmatpush2.msra.mxu0 0.0
    %2247 = vmatprep.mubr.f32.mxu0 0.0
    %2248 = vmatmul.mubr.f32.gmra.mxu0 %v1125
    %v2249 = vpop.f32.mrf.mxu0
    %v2250 = vadd.f32 %v1047, %v2249
    %v2251 = vpop.f32.mrf.mxu0
    %2252 = vmatprep.mubr.f32.mxu0 0.0
    %2253 = vmatmul.mubr.f32.gmra.mxu0 %v1128
    %v2254 = vpop.f32.mrf.mxu0
    %v2255 = vadd.f32 %v1052, %v2254
    %v2256 = vpop.f32.mrf.mxu0
    %2257 = vmatprep.mubr.f32.mxu0 0.0
    %2258 = vmatmul.mubr.f32.gmra.mxu0 %v1131
    %v2259 = vpop.f32.mrf.mxu0
    %v2260 = vadd.f32 %v1057, %v2259
    %v2261 = vpop.f32.mrf.mxu0
    %2262 = vmatprep.mubr.f32.mxu0 0.0
    %2263 = vmatmul.mubr.f32.gmra.mxu0 %v1134
    %v2264 = vpop.f32.mrf.mxu0
    %v2265 = vadd.f32 %v1062, %v2264
    %v2266 = vpop.f32.mrf.mxu0
    %2267 = vmatprep.mubr.f32.mxu0 0.0
    %2268 = vmatmul.mubr.f32.gmra.mxu0 %v1137
    %v2269 = vpop.f32.mrf.mxu0
    %v2270 = vadd.f32 %v1067, %v2269
    %v2271 = vpop.f32.mrf.mxu0
    %2272 = vmatprep.mubr.f32.mxu0 0.0
    %2273 = vmatmul.mubr.f32.gmra.mxu0 %v1140
    %v2274 = vpop.f32.mrf.mxu0
    %v2275 = vadd.f32 %v1072, %v2274
    %v2276 = vpop.f32.mrf.mxu0
    %2277 = vmatprep.mubr.f32.mxu0 0.0
    %2278 = vmatmul.mubr.f32.gmra.mxu0 %v1143
    %v2279 = vpop.f32.mrf.mxu0
    %v2280 = vadd.f32 %v1077, %v2279
    %v2281 = vpop.f32.mrf.mxu0
    %2282 = vmatprep.mubr.f32.mxu0 0.0
    %2283 = vmatmul.mubr.f32.gmra.mxu0 %v1146
    %v2284 = vpop.f32.mrf.mxu0
    %v2285 = vadd.f32 %v1082, %v2284
    %v2286 = vpop.f32.mrf.mxu0
    %2287 = vmatprep.mubr.f32.mxu0 0.0
    %2288 = vmatmul.mubr.f32.gmra.mxu0 %v1149
    %v2289 = vpop.f32.mrf.mxu0
    %v2290 = vadd.f32 %v1087, %v2289
    %v2291 = vpop.f32.mrf.mxu0
    %2292 = vmatprep.mubr.f32.mxu0 0.0
    %2293 = vmatmul.mubr.f32.gmra.mxu0 %v1152
    %v2294 = vpop.f32.mrf.mxu0
    %v2295 = vadd.f32 %v1092, %v2294
    %v2296 = vpop.f32.mrf.mxu0
    %2297 = vmatprep.mubr.f32.mxu0 0.0
    %2298 = vmatmul.mubr.f32.gmra.mxu0 %v1155
    %v2299 = vpop.f32.mrf.mxu0
    %v2300 = vadd.f32 %v1097, %v2299
    %v2301 = vpop.f32.mrf.mxu0
    %2302 = vmatprep.mubr.f32.mxu0 0.0
    %2303 = vmatmul.mubr.f32.gmra.mxu0 %v1158
    %v2304 = vpop.f32.mrf.mxu0
    %v2305 = vadd.f32 %v1102, %v2304
    %v2306 = vpop.f32.mrf.mxu0
    %2307 = vmatprep.mubr.f32.mxu0 0.0
    %2308 = vmatmul.mubr.f32.gmra.mxu0 %v1161
    %v2309 = vpop.f32.mrf.mxu0
    %v2310 = vadd.f32 %v1107, %v2309
    %v2311 = vpop.f32.mrf.mxu0
    %2312 = vmatprep.mubr.f32.mxu0 0.0
    %2313 = vmatmul.mubr.f32.gmra.mxu0 %v1164
    %v2314 = vpop.f32.mrf.mxu0
    %v2315 = vadd.f32 %v1112, %v2314
    %v2316 = vpop.f32.mrf.mxu0
    %2317 = vmatprep.mubr.f32.mxu0 0.0
    %2318 = vmatmul.mubr.f32.gmra.mxu0 %v1167
    %v2319 = vpop.f32.mrf.mxu0
    %v2320 = vadd.f32 %v1117, %v2319
    %v2321 = vpop.f32.mrf.mxu0
    %2322 = vmatprep.mubr.f32.mxu0 0.0
    %2323 = vmatmul.mubr.f32.gmra.mxu0 %v1170
    %v2324 = vpop.f32.mrf.mxu0
    %v2325 = vadd.f32 %v1122, %v2324
    %v2326 = vpop.f32.mrf.mxu0
    %2327 = vdwg.mxu0
    %v2328 = vmax.f32 %v2250, 0.0
    %v2329 = vmax.f32 %v2255, 0.0
    %v2330 = vmax.f32 %v2260, 0.0
    %v2331 = vmax.f32 %v2265, 0.0
    %v2332 = vmax.f32 %v2270, 0.0
    %v2333 = vmax.f32 %v2275, 0.0
    %v2334 = vmax.f32 %v2280, 0.0
    %v2335 = vmax.f32 %v2285, 0.0
    %v2336 = vmax.f32 %v2290, 0.0
    %v2337 = vmax.f32 %v2295, 0.0
    %v2338 = vmax.f32 %v2300, 0.0
    %v2339 = vmax.f32 %v2305, 0.0
    %v2340 = vmax.f32 %v2310, 0.0
    %v2341 = vmax.f32 %v2315, 0.0
    %v2342 = vmax.f32 %v2320, 0.0
    %v2343 = vmax.f32 %v2325, 0.0
    %2344 = vmatprep.subr.mxu0 0.0
    %2345 = vmatpush1.msra.mxu0 %v2343
    %2346 = vmatprep.subr.mxu0 0.0
    %2347 = vmatpush1.msra.mxu0 %v2342
    %2348 = vmatprep.subr.mxu0 0.0
    %2349 = vmatpush1.msra.mxu0 %v2341
    %2350 = vmatprep.subr.mxu0 0.0
    %2351 = vmatpush1.msra.mxu0 %v2340
    %2352 = vmatprep.subr.mxu0 0.0
    %2353 = vmatpush1.msra.mxu0 %v2339
    %2354 = vmatprep.subr.mxu0 0.0
    %2355 = vmatpush1.msra.mxu0 %v2338
    %2356 = vmatprep.subr.mxu0 0.0
    %2357 = vmatpush1.msra.mxu0 %v2337
    %2358 = vmatprep.subr.mxu0 0.0
    %2359 = vmatpush1.msra.mxu0 %v2336
    %2360 = vmatprep.subr.mxu0 0.0
    %2361 = vmatpush1.msra.mxu0 %v2335
    %2362 = vmatprep.subr.mxu0 0.0
    %2363 = vmatpush1.msra.mxu0 %v2334
    %2364 = vmatprep.subr.mxu0 0.0
    %2365 = vmatpush1.msra.mxu0 %v2333
    %2366 = vmatprep.subr.mxu0 0.0
    %2367 = vmatpush1.msra.mxu0 %v2332
    %2368 = vmatprep.subr.mxu0 0.0
    %2369 = vmatpush1.msra.mxu0 %v2331
    %2370 = vmatprep.subr.mxu0 0.0
    %2371 = vmatpush1.msra.mxu0 %v2330
    %2372 = vmatprep.subr.mxu0 0.0
    %2373 = vmatpush1.msra.mxu0 %v2329
    %2374 = vmatprep.subr.mxu0 0.0
    %2375 = vmatpush1.msra.mxu0 %v2328
    %2376 = vmatprep.subr.mxu0 0.0
    %2377 = vmatpush2.msra.mxu0 0.0
    %2378 = vmatprep.subr.mxu0 0.0
    %2379 = vmatpush2.msra.mxu0 0.0
    %2380 = vmatprep.subr.mxu0 0.0
    %2381 = vmatpush2.msra.mxu0 0.0
    %2382 = vmatprep.subr.mxu0 0.0
    %2383 = vmatpush2.msra.mxu0 0.0
    %2384 = vmatprep.subr.mxu0 0.0
    %2385 = vmatpush2.msra.mxu0 0.0
    %2386 = vmatprep.subr.mxu0 0.0
    %2387 = vmatpush2.msra.mxu0 0.0
    %2388 = vmatprep.subr.mxu0 0.0
    %2389 = vmatpush2.msra.mxu0 0.0
    %2390 = vmatprep.subr.mxu0 0.0
    %2391 = vmatpush2.msra.mxu0 0.0
    %2392 = vmatprep.subr.mxu0 0.0
    %2393 = vmatpush2.msra.mxu0 0.0
    %2394 = vmatprep.subr.mxu0 0.0
    %2395 = vmatpush2.msra.mxu0 0.0
    %2396 = vmatprep.subr.mxu0 0.0
    %2397 = vmatpush2.msra.mxu0 0.0
    %2398 = vmatprep.subr.mxu0 0.0
    %2399 = vmatpush2.msra.mxu0 0.0
    %2400 = vmatprep.subr.mxu0 0.0
    %2401 = vmatpush2.msra.mxu0 0.0
    %2402 = vmatprep.subr.mxu0 0.0
    %2403 = vmatpush2.msra.mxu0 0.0
    %2404 = vmatprep.subr.mxu0 0.0
    %2405 = vmatpush2.msra.mxu0 0.0
    %2406 = vmatprep.subr.mxu0 0.0
    %2407 = vmatpush2.msra.mxu0 0.0
    %2408 = vmatprep.mubr.f32.mxu0 0.0
    %2409 = vmatmul.mubr.f32.gmra.mxu0 %v190
    %v2410 = vpop.f32.mrf.mxu0
    %v2411 = vadd.f32 %v1336, %v2410
    %v2412 = vpop.f32.mrf.mxu0
    %2413 = vmatprep.mubr.f32.mxu0 0.0
    %2414 = vmatmul.mubr.f32.gmra.mxu0 %v191
    %v2415 = vpop.f32.mrf.mxu0
    %v2416 = vadd.f32 %v1341, %v2415
    %v2417 = vpop.f32.mrf.mxu0
    %2418 = vmatprep.mubr.f32.mxu0 0.0
    %2419 = vmatmul.mubr.f32.gmra.mxu0 %v192
    %v2420 = vpop.f32.mrf.mxu0
    %v2421 = vadd.f32 %v1346, %v2420
    %v2422 = vpop.f32.mrf.mxu0
    %2423 = vdwg.mxu0
    %v2426 = vrot.slane %v2416, 4
    %v2427 = vrot.slane %v2421, 4
    %v2428 = vsel %vm1430, %v2426, %v2427
    %v2431 = vadd.f32 %v1436, %v2428
    %v2432 = vadd.f32 %v1437, %v2427
    %s2433 = scalar_lea.vmem %s13, 16
    %2434 = vst [vmem:[%s2433] sm:$0xff] %v2411
    %2435 = vst [vmem:[%s2433 + $0x8] sm:$0xf] %v2416
    %s2436 = scalar_lea.vmem %s13, 48
    %2437 = vst [vmem:[%s2436] sm:$0xff] %v2431
    %2438 = vst [vmem:[%s2436 + $0x8] sm:$0xf] %v2432
    // Predicated region
    $region66: #{beats_ode_block_rollout.1} parent=1 // pred_check
      _
    $region67: #{beats_ode_block_rollout.1} parent=1 // pred_check_branch
      %2440 = sbr.rel (0) target = $region69
    $region68: #{beats_ode_block_rollout.1} parent=1 // pred_region
      _
    $region69: #{beats_ode_block_rollout.1} parent=1 // pred_fallthru
      _
    // Predicated region
    $region70: #{beats_ode_block_rollout.1} parent=1 // pred_check
      _
    $region71: #{beats_ode_block_rollout.1} parent=1 // pred_check_branch
      %2442 = sbr.rel (0) target = $region73
    $region72: #{beats_ode_block_rollout.1} parent=1 // pred_region
      _
    $region73: #{beats_ode_block_rollout.1} parent=1 // pred_fallthru
      _
    %2443 = vsyncpa [#allocation4], 1
    %2444 = vsyncpa [#allocation6], 1

</llo_original>
